<compile_context>
chip_gen: v5e
topology: v5e:2x2
jax: 0.10.0
libtpu: 0.0.40
codegen_flags: <defaults>
</compile_context>

<pallas_src>
import math
import jax
import jax.numpy as jnp
from jax.experimental import pallas as pl
from jax.experimental.pallas import tpu as pltpu

D_IN = 784       # input features (hardcoded in the PyTorch module)
N_HID = 100      # hidden width
N_OUT = 10       # output classes
H_PAD = 128      # hidden 100 -> 128 (lane-dense)
O_PAD = 128      # output 10 -> 128 (lane-dense, unmasked vst)
MAX_TILE_B = 512 # per-review: raise toward 512-1024 only for large aggregated batches


def _mlp_kernel(x_ref, w1_ref, w2_ref, w3_ref, b_ref, o_ref):
    # x arrives in its original dtype (f32 or bf16); single cast in VMEM.
    x = x_ref[...].astype(jnp.bfloat16)                                 # (TB, 784)
    # Layer 1: bf16 operands, f32 accumulation; intermediates stay f32.
    h1 = jnp.dot(x, w1_ref[...], preferred_element_type=jnp.float32)    # (TB, 128)
    h1 = jnp.maximum(h1 + b_ref[0:1, :], 0.0)
    # Layer 2
    h2 = jnp.dot(h1.astype(jnp.bfloat16), w2_ref[...],
                 preferred_element_type=jnp.float32)                    # (TB, 128)
    h2 = jnp.maximum(h2 + b_ref[1:2, :], 0.0)
    # Layer 3 (columns >= 10 are zero-padded weights/bias)
    out = jnp.dot(h2.astype(jnp.bfloat16), w3_ref[...],
                  preferred_element_type=jnp.float32)                   # (TB, 128)
    o_ref[...] = (out + b_ref[2:3, :]).astype(o_ref.dtype)


def _pad2(a, rows, cols, dtype):
    """Zero-pad a 2-D array up to (rows, cols) and cast."""
    out = jnp.zeros((rows, cols), dtype=dtype)
    return out.at[: a.shape[0], : a.shape[1]].set(a.astype(dtype))


def prepare_params(params):
    """Pad/cast the parameters ONCE (cache across the many LaMAML forward calls):
    weights -> lane-dense bf16, biases stacked into one resident (3, 128) f32 block."""
    w1, b1, w2, b2, w3, b3 = params
    w1p = _pad2(w1, D_IN, H_PAD, jnp.bfloat16)    # (784, 128)
    w2p = _pad2(w2, H_PAD, H_PAD, jnp.bfloat16)   # (128, 128)
    w3p = _pad2(w3, H_PAD, O_PAD, jnp.bfloat16)   # (128, 128)
    b_all = jnp.zeros((3, H_PAD), dtype=jnp.float32)
    b_all = b_all.at[0, : b1.shape[-1]].set(b1.reshape(-1).astype(jnp.float32))
    b_all = b_all.at[1, : b2.shape[-1]].set(b2.reshape(-1).astype(jnp.float32))
    b_all = b_all.at[2, : b3.shape[-1]].set(b3.reshape(-1).astype(jnp.float32))
    return (w1p, w2p, w3p, b_all)


def _choose_tile_b(B):
    """Pick a batch tile: >=2 grid steps when possible (both v7x TensorCores busy),
    multiple of 16 (bf16 sublane packing), capped at MAX_TILE_B."""
    if B <= 32:
        return B                          # block dim == full array dim: always legal
    half = pl.cdiv(B, 2)
    half = ((half + 15) // 16) * 16
    return int(min(MAX_TILE_B, half))


def mlp_forward(x, prepared):
    """Fused 3-layer MLP forward on the raw (B, 784) activations.
    `prepared` = prepare_params(params), computed once and reused."""
    w1p, w2p, w3p, b_all = prepared
    B = x.shape[0]
    tile_b = _choose_tile_b(B)
    nb = pl.cdiv(B, tile_b)

    # Constant index_map -> block stays resident in VMEM across all batch tiles.
    resident = lambda a: pl.BlockSpec(a.shape, lambda i: (0,) * a.ndim)

    cost = pl.CostEstimate(
        flops=2 * B * (D_IN * N_HID + N_HID * N_HID + N_HID * N_OUT),
        transcendentals=0,
        bytes_accessed=int(x.size) * x.dtype.itemsize
        + sum(int(a.size) * a.dtype.itemsize for a in prepared)
        + B * O_PAD * 4,
    )

    out_pad = pl.pallas_call(
        _mlp_kernel,
        out_shape=jax.ShapeDtypeStruct((B, O_PAD), jnp.float32),
        grid=(nb,),
        in_specs=[
            # x: batch-tiled; last block dim 784 equals the full array dim, and the
            # ragged last batch tile is handled by Pallas (masked output writes).
            pl.BlockSpec((tile_b, D_IN), lambda i: (i, 0)),
            resident(w1p), resident(w2p), resident(w3p), resident(b_all),
        ],
        out_specs=pl.BlockSpec((tile_b, O_PAD), lambda i: (i, 0)),
        compiler_params=pltpu.CompilerParams(dimension_semantics=("parallel",)),
        cost_estimate=cost,
    )(x, w1p, w2p, w3p, b_all)

    # Only the 10 -> 128 lane padding is sliced away (no batch padding exists).
    return out_pad[:, :N_OUT]


def init_params(key):
    """Deterministic init matching the PyTorch module:
    kaiming_normal_ (fan_in, gain=sqrt(2)) for weights, zeros for biases.
    Weights stored as [in, out] (transpose of torch's [out, in])."""
    dims = [(D_IN, N_HID), (N_HID, N_HID), (N_HID, N_OUT)]
    params = []
    for fan_in, fan_out in dims:
        key, sub = jax.random.split(key)
        std = math.sqrt(2.0 / fan_in)
        w = jax.random.normal(sub, (fan_in, fan_out), dtype=jnp.float32) * std
        b = jnp.zeros((1, fan_out), dtype=jnp.float32)
        params.extend([w, b])
    return tuple(params)


def mlp_reference_f32(x, params):
    """Pure-f32 JAX reference (PyTorch-equivalent math)."""
    w1, b1, w2, b2, w3, b3 = params
    h1 = jnp.maximum(x @ w1 + b1, 0.0)
    h2 = jnp.maximum(h1 @ w2 + b2, 0.0)
    return h2 @ w3 + b3


def mlp_reference_mixed(x, params):
    """Reference mirroring the kernel: bf16 dot operands, f32 accumulation,
    f32 intermediates."""
    w1, b1, w2, b2, w3, b3 = params
    bf = jnp.bfloat16
    h1 = jnp.dot(x.astype(bf), w1.astype(bf), preferred_element_type=jnp.float32)
    h1 = jnp.maximum(h1 + b1, 0.0)
    h2 = jnp.dot(h1.astype(bf), w2.astype(bf), preferred_element_type=jnp.float32)
    h2 = jnp.maximum(h2 + b2, 0.0)
    return jnp.dot(h2.astype(bf), w3.astype(bf), preferred_element_type=jnp.float32) + b3


# TODO(synk): MetaSGD inner-loop adaptation, Adam outer update, CrossEntropyLoss and
# the reservoir replay buffer (push_to_mem / getBatch) are host-side training logic,
# not part of the forward pass, and are intentionally not implemented as kernels.

if __name__ == "__main__":
    key = jax.random.PRNGKey(0)
    key, kx = jax.random.split(key)

    # Aggregated batch; deliberately NOT a multiple of the chosen batch tile so the
    # ragged-last-tile path is exercised.
    B = 200
    x = jax.random.normal(kx, (B, D_IN), dtype=jnp.float32)
    params = init_params(key)
    prepared = prepare_params(params)   # padded/cast once, reused across forward calls

    out = mlp_forward(x, prepared)
    out = jax.block_until_ready(out)
    assert out.shape == (B, N_OUT)
    assert bool(jnp.all(jnp.isfinite(out)))

    # Tight check vs. a reference doing the same bf16-operand / f32-accumulate math.
    ref_mixed = mlp_reference_mixed(x, params)
    assert jnp.allclose(out, ref_mixed, atol=5e-3, rtol=5e-3), "mismatch vs mixed reference"

    # Loose check vs. the pure-f32 (PyTorch-equivalent) reference.
    ref_f32 = mlp_reference_f32(x, params)
    assert jnp.allclose(out, ref_f32, atol=1e-1, rtol=5e-2), "mismatch vs f32 reference"

    print("KERNEL_OK")
</pallas_src>

<mosaic_0001>
module attributes {stable_mosaic.version = 11 : i64} {
  func.func @_mlp_kernel(%arg0: i32, %arg1: memref<112x784xf32, #tpu.memory_space<vmem>>, %arg2: memref<784x128xbf16, #tpu.memory_space<vmem>>, %arg3: memref<128x128xbf16, #tpu.memory_space<vmem>>, %arg4: memref<128x128xbf16, #tpu.memory_space<vmem>>, %arg5: memref<3x128xf32, #tpu.memory_space<vmem>>, %arg6: memref<112x128xf32, #tpu.memory_space<vmem>>) attributes {dimension_semantics = [#tpu.dimension_semantics<parallel>], iteration_bounds = array<i64: 2>, scalar_prefetch = 0 : i64, scratch_operands = 0 : i64, tpu.core_type = #tpu.core_type<tc>, window_params = [{transform_indices = @transform_0, window_bounds = array<i64: 112, 784>}, {pipeline_mode = #tpu.pipeline_mode<synchronous>, transform_indices = @transform_1, window_bounds = array<i64: 784, 128>}, {pipeline_mode = #tpu.pipeline_mode<synchronous>, transform_indices = @transform_2, window_bounds = array<i64: 128, 128>}, {pipeline_mode = #tpu.pipeline_mode<synchronous>, transform_indices = @transform_3, window_bounds = array<i64: 128, 128>}, {pipeline_mode = #tpu.pipeline_mode<synchronous>, transform_indices = @transform_4, window_bounds = array<i64: 3, 128>}, {transform_indices = @transform_5, window_bounds = array<i64: 112, 128>}]} {
    %c0 = arith.constant 0 : index
    %c0_0 = arith.constant 0 : index
    %0 = vector.load %arg1[%c0, %c0_0] : memref<112x784xf32, #tpu.memory_space<vmem>>, vector<112x784xf32>
    %1 = arith.truncf %0 : vector<112x784xf32> to vector<112x784xbf16>
    %c0_1 = arith.constant 0 : index
    %c0_2 = arith.constant 0 : index
    %2 = vector.load %arg2[%c0_1, %c0_2] : memref<784x128xbf16, #tpu.memory_space<vmem>>, vector<784x128xbf16>
    %cst = arith.constant dense<0.000000e+00> : vector<112x128xf32>
    %3 = tpu.matmul %1, %2, %cst {dimension_numbers = #tpu.dot_dimension_numbers<[1], [0], [0], [1], [0, 0, 1, 1], [], []>} : vector<112x784xbf16>, vector<784x128xbf16>, vector<112x128xf32> -> vector<112x128xf32>
    %c0_3 = arith.constant 0 : index
    %c0_4 = arith.constant 0 : index
    %4 = vector.load %arg5[%c0_3, %c0_4] : memref<3x128xf32, #tpu.memory_space<vmem>>, vector<1x128xf32>
    %5 = vector.broadcast %4 : vector<1x128xf32> to vector<112x128xf32>
    %6 = arith.addf %3, %5 : vector<112x128xf32>
    %cst_5 = arith.constant 0.000000e+00 : f32
    %7 = vector.broadcast %cst_5 : f32 to vector<112x128xf32>
    %8 = arith.maximumf %6, %7 : vector<112x128xf32>
    %9 = arith.truncf %8 : vector<112x128xf32> to vector<112x128xbf16>
    %c0_6 = arith.constant 0 : index
    %c0_7 = arith.constant 0 : index
    %10 = vector.load %arg3[%c0_6, %c0_7] : memref<128x128xbf16, #tpu.memory_space<vmem>>, vector<128x128xbf16>
    %cst_8 = arith.constant dense<0.000000e+00> : vector<112x128xf32>
    %11 = tpu.matmul %9, %10, %cst_8 {dimension_numbers = #tpu.dot_dimension_numbers<[1], [0], [0], [1], [0, 0, 1, 1], [], []>} : vector<112x128xbf16>, vector<128x128xbf16>, vector<112x128xf32> -> vector<112x128xf32>
    %c1 = arith.constant 1 : index
    %c0_9 = arith.constant 0 : index
    %12 = vector.load %arg5[%c1, %c0_9] : memref<3x128xf32, #tpu.memory_space<vmem>>, vector<1x128xf32>
    %13 = vector.broadcast %12 : vector<1x128xf32> to vector<112x128xf32>
    %14 = arith.addf %11, %13 : vector<112x128xf32>
    %cst_10 = arith.constant 0.000000e+00 : f32
    %15 = vector.broadcast %cst_10 : f32 to vector<112x128xf32>
    %16 = arith.maximumf %14, %15 : vector<112x128xf32>
    %17 = arith.truncf %16 : vector<112x128xf32> to vector<112x128xbf16>
    %c0_11 = arith.constant 0 : index
    %c0_12 = arith.constant 0 : index
    %18 = vector.load %arg4[%c0_11, %c0_12] : memref<128x128xbf16, #tpu.memory_space<vmem>>, vector<128x128xbf16>
    %cst_13 = arith.constant dense<0.000000e+00> : vector<112x128xf32>
    %19 = tpu.matmul %17, %18, %cst_13 {dimension_numbers = #tpu.dot_dimension_numbers<[1], [0], [0], [1], [0, 0, 1, 1], [], []>} : vector<112x128xbf16>, vector<128x128xbf16>, vector<112x128xf32> -> vector<112x128xf32>
    %c2 = arith.constant 2 : index
    %c0_14 = arith.constant 0 : index
    %20 = vector.load %arg5[%c2, %c0_14] : memref<3x128xf32, #tpu.memory_space<vmem>>, vector<1x128xf32>
    %21 = vector.broadcast %20 : vector<1x128xf32> to vector<112x128xf32>
    %22 = arith.addf %19, %21 : vector<112x128xf32>
    %c0_15 = arith.constant 0 : index
    %c0_16 = arith.constant 0 : index
    %23 = vector.load %arg6[%c0_15, %c0_16] : memref<112x128xf32, #tpu.memory_space<vmem>>, vector<112x128xf32>
    tpu.vector_store %arg6[%c0_15, %c0_16], %22 {strides = array<i32>} : memref<112x128xf32, #tpu.memory_space<vmem>>, vector<112x128xf32>,
    return
  }
  func.func @transform_0(%arg0: i32) -> (i32, i32) {
    %c0_i32 = arith.constant 0 : i32
    %c0_i32_0 = arith.constant 0 : i32
    return %arg0, %c0_i32 : i32, i32
  }
  func.func @transform_1(%arg0: i32) -> (i32, i32) {
    %c0_i32 = arith.constant 0 : i32
    %c0_i32_0 = arith.constant 0 : i32
    %c0_i32_1 = arith.constant 0 : i32
    return %c0_i32, %c0_i32_0 : i32, i32
  }
  func.func @transform_2(%arg0: i32) -> (i32, i32) {
    %c0_i32 = arith.constant 0 : i32
    %c0_i32_0 = arith.constant 0 : i32
    %c0_i32_1 = arith.constant 0 : i32
    return %c0_i32, %c0_i32_0 : i32, i32
  }
  func.func @transform_3(%arg0: i32) -> (i32, i32) {
    %c0_i32 = arith.constant 0 : i32
    %c0_i32_0 = arith.constant 0 : i32
    %c0_i32_1 = arith.constant 0 : i32
    return %c0_i32, %c0_i32_0 : i32, i32
  }
  func.func @transform_4(%arg0: i32) -> (i32, i32) {
    %c0_i32 = arith.constant 0 : i32
    %c0_i32_0 = arith.constant 0 : i32
    %c0_i32_1 = arith.constant 0 : i32
    return %c0_i32, %c0_i32_0 : i32, i32
  }
  func.func @transform_5(%arg0: i32) -> (i32, i32) {
    %c0_i32 = arith.constant 0 : i32
    %c0_i32_0 = arith.constant 0 : i32
    return %arg0, %c0_i32 : i32, i32
  }
}

</mosaic_0001>

<llo_original>
// kernel: tpu_custom_call.1
$region0: #{tpu_custom_call.1}
  #allocation0 [shape = 'u32[]', space=smem, size = 0x4, offset = 0x4, fixed_abs, tag = 'smem constant byte address 0x4 - core index']
  #allocation1 [shape = 'u32[72,128]{1,0:T(1,128)}', space=vmem, size = 0x9000, scoped, tag = 'internal scratch']
  %s0 = inlined_call_operand.hbm [shape: f32[200,784], index: 0, kind: input, shape index: {}]
  %s1 = inlined_call_operand.hbm [shape: bf16[784,128], index: 1, kind: input, shape index: {}]
  %s2 = inlined_call_operand.hbm [shape: bf16[128,128], index: 2, kind: input, shape index: {}]
  %s3 = inlined_call_operand.hbm [shape: bf16[128,128], index: 3, kind: input, shape index: {}]
  %s4 = inlined_call_operand.hbm [shape: f32[3,128], index: 4, kind: input, shape index: {}]
  %s5 = inlined_call_operand.hbm [shape: f32[200,128], index: 5, kind: output, shape index: {}]
  %s6 = sld [smem:[#allocation0]]
  $region73: #{tpu_custom_call.1} parent=0
    _
  %s8 = ssub.s32 1, %s6
  %s9 = scalar_select 0, %s8, %s6
  $region1: #{tpu_custom_call.1} parent=0
    #allocation2 [shape = 'u8[802816]{0}', space=vmem, size = 0xc4000, scoped, tag = 'input window, operand 0']
    #allocation3 [shape = 's32[2]{0}', space=sflag, size = 0x8, scoped, tag = 'scoped memory for tpu_custom_call.1']
    #allocation4 [shape = 's32[2]{0}', space=sflag, size = 0x8, scoped, tag = 'scoped memory for tpu_custom_call.1']
    #allocation5 [shape = 'u8[200704]{0}', space=vmem, size = 0x31000, scoped, tag = 'input window, operand 1, single buffered']
    #allocation6 [shape = 's32[1]{0}', space=sflag, size = 0x4, scoped, tag = 'scoped memory for tpu_custom_call.1']
    #allocation7 [shape = 'u8[32768]{0}', space=vmem, size = 0x8000, scoped, tag = 'input window, operand 2, single buffered']
    #allocation8 [shape = 'u8[32768]{0}', space=vmem, size = 0x8000, scoped, tag = 'input window, operand 3, single buffered']
    #allocation9 [shape = 's32[1]{0}', space=sflag, size = 0x4, scoped, tag = 'scoped memory for tpu_custom_call.1']
    #allocation10 [shape = 'u8[2048]{0}', space=vmem, size = 0x800, scoped, tag = 'input window, operand 4, single buffered']
    #allocation11 [shape = 'u8[114688]{0}', space=vmem, size = 0x1c000, scoped, tag = 'output window, operand 0']
    %10 = vsyncpa [#allocation3], 0
    %s11 = scalar_lea.sflag [#allocation3], 1
    %12 = vsyncpa %s11, 0
    %13 = vsyncpa [#allocation6], 0
    %14 = vsyncpa [#allocation9], 0
    %15 = vsyncpa [#allocation4], 0
    %s16 = scalar_lea.sflag [#allocation4], 1
    %17 = vsyncpa %s16, 0
    loop: start=0, step=1, limit=4
    $region2: #{tpu_custom_call.1} parent=1 // loop_pre_header
      _
    $region3: #{tpu_custom_call.1} parent=1 // loop_header
      %s19 = sphi 0, %s23
      %p20 = scmp.ge.s32.totalorder %s19, 4
      %s29 = sphi 0, %s31
      %s32 = sphi 0, %s29
      %s33 = sphi 0, %s32
      %s49 = sphi 0, %s33
      %s53 = sphi 0, %s53
      %s55 = sphi 0, %s53
      %s56 = sphi 0, %s55
      %s70 = sphi 0, %s56
      %s74 = sphi 0, %s74
      %s76 = sphi 0, %s74
      %s77 = sphi 0, %s76
      %s91 = sphi 0, %s77
      %s95 = sphi 0, %s95
      %s97 = sphi 0, %s95
      %s98 = sphi 0, %s97
      %s112 = sphi 0, %s98
      %s116 = sphi 0, %s116
      %s118 = sphi 0, %s116
      %s119 = sphi 0, %s118
      %s133 = sphi 0, %s119
      %s139 = sphi 0, %s141
      %s142 = sphi 0, %s139
      %s143 = sphi 0, %s142
      %s159 = sphi 0, %s143
    $region4: #{tpu_custom_call.1} parent=1 // loop_header_branch
      %22 = sbr.rel (%p20) target = $region8
    $region5: #{tpu_custom_call.1} parent=1 // loop_body
      %s24 = ssub.s32 %s19, 1
      %s25 = ssub.s32 %s19, 2
      %s26 = sadd.s32 %s19, 1
      %s27 = ssub.s32 %s19, %s26
      %p28 = scmp.eq.s32.totalorder %s27, 0
      %s30 = sadd.s32 %s29, 1
      %s31 = scalar_select %p28, %s29, %s30
      %p34 = pneg %p28
      %p35 = scmp.eq.s32.totalorder %s19, 1
      %p36 = por %p34, %p35
      %p37 = scmp.ne.s32.totalorder %s29, %s32
      %p38 = scmp.eq.s32.totalorder %s19, 0
      %p39 = por %p37, %p38
      %p40 = scmp.ne.s32.totalorder %s29, %s32
      %p41 = scmp.eq.s32.totalorder %s24, 1
      %p42 = por %p40, %p41
      %p43 = scmp.ne.s32.totalorder %s32, %s33
      %p44 = scmp.eq.s32.totalorder %s24, 0
      %p45 = por %p43, %p44
      %p46 = scmp.ne.s32.totalorder %s32, %s33
      %p47 = scmp.eq.s32.totalorder %s25, 1
      %p48 = por %p46, %p47
      %p50 = scmp.ne.s32.totalorder %s33, %s49
      %p51 = scmp.eq.s32.totalorder %s25, 0
      %p52 = por %p50, %p51
      %s54 = sadd.s32 %s53, 1
      %p57 = scmp.eq.s32.totalorder %s19, 1
      %p58 = scmp.ne.s32.totalorder %s53, %s55
      %p59 = scmp.eq.s32.totalorder %s19, 0
      %p60 = por %p58, %p59
      %p61 = scmp.ne.s32.totalorder %s53, %s55
      %p62 = scmp.eq.s32.totalorder %s24, 1
      %p63 = por %p61, %p62
      %p64 = scmp.ne.s32.totalorder %s55, %s56
      %p65 = scmp.eq.s32.totalorder %s24, 0
      %p66 = por %p64, %p65
      %p67 = scmp.ne.s32.totalorder %s55, %s56
      %p68 = scmp.eq.s32.totalorder %s25, 1
      %p69 = por %p67, %p68
      %p71 = scmp.ne.s32.totalorder %s56, %s70
      %p72 = scmp.eq.s32.totalorder %s25, 0
      %p73 = por %p71, %p72
      %s75 = sadd.s32 %s74, 1
      %p78 = scmp.eq.s32.totalorder %s19, 1
      %p79 = scmp.ne.s32.totalorder %s74, %s76
      %p80 = scmp.eq.s32.totalorder %s19, 0
      %p81 = por %p79, %p80
      %p82 = scmp.ne.s32.totalorder %s74, %s76
      %p83 = scmp.eq.s32.totalorder %s24, 1
      %p84 = por %p82, %p83
      %p85 = scmp.ne.s32.totalorder %s76, %s77
      %p86 = scmp.eq.s32.totalorder %s24, 0
      %p87 = por %p85, %p86
      %p88 = scmp.ne.s32.totalorder %s76, %s77
      %p89 = scmp.eq.s32.totalorder %s25, 1
      %p90 = por %p88, %p89
      %p92 = scmp.ne.s32.totalorder %s77, %s91
      %p93 = scmp.eq.s32.totalorder %s25, 0
      %p94 = por %p92, %p93
      %s96 = sadd.s32 %s95, 1
      %p99 = scmp.eq.s32.totalorder %s19, 1
      %p100 = scmp.ne.s32.totalorder %s95, %s97
      %p101 = scmp.eq.s32.totalorder %s19, 0
      %p102 = por %p100, %p101
      %p103 = scmp.ne.s32.totalorder %s95, %s97
      %p104 = scmp.eq.s32.totalorder %s24, 1
      %p105 = por %p103, %p104
      %p106 = scmp.ne.s32.totalorder %s97, %s98
      %p107 = scmp.eq.s32.totalorder %s24, 0
      %p108 = por %p106, %p107
      %p109 = scmp.ne.s32.totalorder %s97, %s98
      %p110 = scmp.eq.s32.totalorder %s25, 1
      %p111 = por %p109, %p110
      %p113 = scmp.ne.s32.totalorder %s98, %s112
      %p114 = scmp.eq.s32.totalorder %s25, 0
      %p115 = por %p113, %p114
      %s117 = sadd.s32 %s116, 1
      %p120 = scmp.eq.s32.totalorder %s19, 1
      %p121 = scmp.ne.s32.totalorder %s116, %s118
      %p122 = scmp.eq.s32.totalorder %s19, 0
      %p123 = por %p121, %p122
      %p124 = scmp.ne.s32.totalorder %s116, %s118
      %p125 = scmp.eq.s32.totalorder %s24, 1
      %p126 = por %p124, %p125
      %p127 = scmp.ne.s32.totalorder %s118, %s119
      %p128 = scmp.eq.s32.totalorder %s24, 0
      %p129 = por %p127, %p128
      %p130 = scmp.ne.s32.totalorder %s118, %s119
      %p131 = scmp.eq.s32.totalorder %s25, 1
      %p132 = por %p130, %p131
      %p134 = scmp.ne.s32.totalorder %s119, %s133
      %p135 = scmp.eq.s32.totalorder %s25, 0
      %p136 = por %p134, %p135
      %s137 = ssub.s32 %s19, %s26
      %p138 = scmp.eq.s32.totalorder %s137, 0
      %s140 = sadd.s32 %s139, 1
      %s141 = scalar_select %p138, %s139, %s140
      %p144 = pneg %p138
      %p145 = scmp.eq.s32.totalorder %s19, 1
      %p146 = por %p144, %p145
      %p147 = scmp.ne.s32.totalorder %s139, %s142
      %p148 = scmp.eq.s32.totalorder %s19, 0
      %p149 = por %p147, %p148
      %p150 = scmp.ne.s32.totalorder %s139, %s142
      %p151 = scmp.eq.s32.totalorder %s24, 1
      %p152 = por %p150, %p151
      %p153 = scmp.ne.s32.totalorder %s142, %s143
      %p154 = scmp.eq.s32.totalorder %s24, 0
      %p155 = por %p153, %p154
      %p156 = scmp.ne.s32.totalorder %s142, %s143
      %p157 = scmp.eq.s32.totalorder %s25, 1
      %p158 = por %p156, %p157
      %p160 = scmp.ne.s32.totalorder %s143, %s159
      %p161 = scmp.eq.s32.totalorder %s25, 0
      %p162 = por %p160, %p161
      %p163 = scmp.le.s32.totalorder 1, %s19
      %p164 = scmp.lt.s32.totalorder %s19, 3
      %p165 = pnand %p163, %p164
      %p166 = pneg %p165
      // Predicated region
      $region9: #{tpu_custom_call.1} parent=5 // pred_check
        _
      $region10: #{tpu_custom_call.1} parent=5 // pred_check_branch
        %168 = sbr.rel (%p165) target = $region12
      $region11: #{tpu_custom_call.1} parent=5 // pred_region
        %s169 = ssub.s32 %s19, 1
        // Predicated region
        $region13: #{tpu_custom_call.1} parent=11 // pred_check
          %p170 = pneg %p66
        $region14: #{tpu_custom_call.1} parent=11 // pred_check_branch
          %172 = sbr.rel (%p170) target = $region16
        $region15: #{tpu_custom_call.1} parent=11 // pred_region
          %174 = vsyncadd [#allocation6], 0
          %s175 = sshll.u32 %s1, 4
          %s176 = int_to_ptr.hbm [resolvable:$true] %s175
          %s177 = sshll.u32 [#allocation5], 4
          %s178 = int_to_ptr.vmem [resolvable:$true] %s177
          %183 = dma.hbm_to_vmem [thread:$0]  %s176, 6272, %s178, [#allocation6], 64, 64, 4
        $region16: #{tpu_custom_call.1} parent=11 // pred_fallthru
          _
        // Predicated region
        $region17: #{tpu_custom_call.1} parent=11 // pred_check
          %p184 = pneg %p87
        $region18: #{tpu_custom_call.1} parent=11 // pred_check_branch
          %186 = sbr.rel (%p184) target = $region20
        $region19: #{tpu_custom_call.1} parent=11 // pred_region
          %188 = vsyncadd [#allocation6], 0
          %s189 = sshll.u32 %s2, 4
          %s190 = int_to_ptr.hbm [resolvable:$true] %s189
          %s191 = sshll.u32 [#allocation7], 4
          %s192 = int_to_ptr.vmem [resolvable:$true] %s191
          %197 = dma.hbm_to_vmem [thread:$0]  %s190, 1024, %s192, [#allocation6], 64, 64, 4
        $region20: #{tpu_custom_call.1} parent=11 // pred_fallthru
          _
        // Predicated region
        $region21: #{tpu_custom_call.1} parent=11 // pred_check
          %p198 = pneg %p108
        $region22: #{tpu_custom_call.1} parent=11 // pred_check_branch
          %200 = sbr.rel (%p198) target = $region24
        $region23: #{tpu_custom_call.1} parent=11 // pred_region
          %202 = vsyncadd [#allocation9], 0
          %s203 = sshll.u32 %s3, 4
          %s204 = int_to_ptr.hbm [resolvable:$true] %s203
          %s205 = sshll.u32 [#allocation8], 4
          %s206 = int_to_ptr.vmem [resolvable:$true] %s205
          %211 = dma.hbm_to_vmem [thread:$0]  %s204, 1024, %s206, [#allocation9], 64, 64, 4
        $region24: #{tpu_custom_call.1} parent=11 // pred_fallthru
          _
        // Predicated region
        $region25: #{tpu_custom_call.1} parent=11 // pred_check
          %p212 = pneg %p129
        $region26: #{tpu_custom_call.1} parent=11 // pred_check_branch
          %214 = sbr.rel (%p212) target = $region28
        $region27: #{tpu_custom_call.1} parent=11 // pred_region
          %216 = vsyncadd [#allocation9], 0
          %s218 = sshll.u32 %s4, 4
          %s219 = int_to_ptr.hbm [resolvable:$true] %s218
          %s220 = sshll.u32 [#allocation10], 4
          %s221 = int_to_ptr.vmem [resolvable:$true] %s220
          %223 = dma.hbm_to_vmem [thread:$0]  %s219, 64, %s221, [#allocation9]
        $region28: #{tpu_custom_call.1} parent=11 // pred_fallthru
          _
      $region12: #{tpu_custom_call.1} parent=5 // pred_fallthru
        _
      %p224 = scmp.lt.s32.totalorder %s19, 2
      // Predicated region
      $region29: #{tpu_custom_call.1} parent=5 // pred_check
        %p225 = pneg %p224
      $region30: #{tpu_custom_call.1} parent=5 // pred_check_branch
        %227 = sbr.rel (%p225) target = $region32
      $region31: #{tpu_custom_call.1} parent=5 // pred_region
        // Predicated region
        $region33: #{tpu_custom_call.1} parent=31 // pred_check
          %p228 = pneg %p39
        $region34: #{tpu_custom_call.1} parent=31 // pred_check_branch
          %230 = sbr.rel (%p228) target = $region36
        $region35: #{tpu_custom_call.1} parent=31 // pred_region
          %s231 = sand.u32 %s29, 1
          %s232 = scalar_lea.sflag [#allocation3], %s231
          %s233 = sand.u32 %s29, 1
          %s234 = smul.addr %s233, 784
          %s235 = scalar_lea.vmem [#allocation2], %s234
          %s236 = smul.u32 14, %s19
          %s237 = ssub.s32 25, %s236
          %p238 = scmp.lt.s32.totalorder %s237, 14
          %s239 = scalar_select %p238, %s237, 14
          %s240 = smul.u32 8, %s239
          %s241 = smul.u32 %s240, 7
          %s242 = ssub.s32 784, %s241
          %s243 = sshll.u32 %s242, 4
          %244 = vsyncadd %s232, %s243
          %p245 = scmp.ne.s32.totalorder 0, %s241
          %s246 = smul.addr %s236, 7
          %s247 = smul.addr %s246, 8
          %s248 = scalar_lea.hbm %s0, %s247
          %s249 = smul.u32 56, %s239
          %s250 = sshll.u32 %s248, 4
          %s251 = int_to_ptr.hbm [resolvable:$true] %s250
          %s252 = sshll.u32 %s235, 4
          %s253 = int_to_ptr.vmem [resolvable:$true] %s252
          %s254 = sshll.u32 %s249, 4
          %258 = dma.hbm_to_vmem [thread:$0]  (%p245), %s251, %s254, %s253, %s232, 896, 896, 56
        $region36: #{tpu_custom_call.1} parent=31 // pred_fallthru
          _
      $region32: #{tpu_custom_call.1} parent=5 // pred_fallthru
        _
      %p259 = scmp.le.s32.totalorder 1, %s19
      %p260 = scmp.lt.s32.totalorder %s19, 3
      %p261 = pnand %p259, %p260
      %p262 = pneg %p261
      // Predicated region
      $region37: #{tpu_custom_call.1} parent=5 // pred_check
        _
      $region38: #{tpu_custom_call.1} parent=5 // pred_check_branch
        %264 = sbr.rel (%p261) target = $region40
      $region39: #{tpu_custom_call.1} parent=5 // pred_region
        %s265 = ssub.s32 %s19, 1
        %s266 = sand.u32 %s32, 1
        %s267 = scalar_lea.sflag [#allocation3], %s266
        %s268 = sand.u32 %s32, 1
        %s269 = smul.addr %s268, 784
        %s270 = scalar_lea.vmem [#allocation2], %s269
        // Predicated region
        $region41: #{tpu_custom_call.1} parent=39 // pred_check
          %p271 = pneg %p45
        $region42: #{tpu_custom_call.1} parent=39 // pred_check_branch
          %273 = sbr.rel (%p271) target = $region44
        $region43: #{tpu_custom_call.1} parent=39 // pred_region
          %275 = dma.done %s267, 12544
        $region44: #{tpu_custom_call.1} parent=39 // pred_fallthru
          _
        // Predicated region
        $region45: #{tpu_custom_call.1} parent=39 // pred_check
          %p276 = pneg %p66
        $region46: #{tpu_custom_call.1} parent=39 // pred_check_branch
          %278 = sbr.rel (%p276) target = $region48
        $region47: #{tpu_custom_call.1} parent=39 // pred_region
          %280 = dma.done [#allocation6], 6272
        $region48: #{tpu_custom_call.1} parent=39 // pred_fallthru
          _
        // Predicated region
        $region49: #{tpu_custom_call.1} parent=39 // pred_check
          %p281 = pneg %p87
        $region50: #{tpu_custom_call.1} parent=39 // pred_check_branch
          %283 = sbr.rel (%p281) target = $region52
        $region51: #{tpu_custom_call.1} parent=39 // pred_region
          %285 = dma.done [#allocation6], 1024
        $region52: #{tpu_custom_call.1} parent=39 // pred_fallthru
          _
        // Predicated region
        $region53: #{tpu_custom_call.1} parent=39 // pred_check
          %p286 = pneg %p108
        $region54: #{tpu_custom_call.1} parent=39 // pred_check_branch
          %288 = sbr.rel (%p286) target = $region56
        $region55: #{tpu_custom_call.1} parent=39 // pred_region
          %290 = dma.done [#allocation9], 1024
        $region56: #{tpu_custom_call.1} parent=39 // pred_fallthru
          _
        // Predicated region
        $region57: #{tpu_custom_call.1} parent=39 // pred_check
          %p291 = pneg %p129
        $region58: #{tpu_custom_call.1} parent=39 // pred_check_branch
          %293 = sbr.rel (%p291) target = $region60
        $region59: #{tpu_custom_call.1} parent=39 // pred_region
          %295 = dma.done [#allocation9], 64
        $region60: #{tpu_custom_call.1} parent=39 // pred_fallthru
          _
        %s296 = sand.u32 %s32, 1
        %s297 = scalar_lea.sflag [#allocation3], %s296
        %s298 = sand.u32 %s32, 1
        %s299 = smul.addr %s298, 784
        %s300 = scalar_lea.vmem [#allocation2], %s299
        %p301 = pneg %p45
        %p302 = pneg %p42
        %p303 = pneg %p66
        %p304 = pneg %p63
        %p305 = pneg %p87
        %p306 = pneg %p84
        %p307 = pneg %p108
        %p308 = pneg %p105
        %p309 = pneg %p129
        %p310 = pneg %p126
        %p311 = pneg %p155
        %p312 = pneg %p152
        %s313 = sand.u32 %s142, 1
        %s314 = scalar_lea.sflag [#allocation4], %s313
        %s315 = sand.u32 %s142, 1
        %s316 = smul.addr %s315, 112
        %s317 = scalar_lea.vmem [#allocation11], %s316
        %s318 = smul.u32 14, %s24
        %s319 = ssub.s32 25, %s318
        %p320 = scmp.lt.s32.totalorder %s319, 14
        %s321 = scalar_select %p320, %s319, 14
        %s322 = smul.u32 8, %s321
        %s323 = smul.u32 %s322, 7
        %s324 = smul.u32 14, %s24
        %s325 = ssub.s32 25, %s324
        %p326 = scmp.lt.s32.totalorder %s325, 14
        %s327 = scalar_select %p326, %s325, 14
        %s328 = smul.u32 8, %s327
        %v330 = vld [vmem:[%s270] sm:$0xff]
        %v331 = vld [vmem:[%s270 + $0x8] sm:$0xff]
        %v332 = vld [vmem:[%s270 + $0x10] sm:$0xff]
        %v333 = vld [vmem:[%s270 + $0x18] sm:$0xff]
        %v334 = vld [vmem:[%s270 + $0x20] sm:$0xff]
        %v335 = vld [vmem:[%s270 + $0x28] sm:$0xff]
        %v336 = vld [vmem:[%s270 + $0x30] sm:$0xff]
        %v337 = vld [vmem:[%s270 + $0x38] sm:$0xff]
        %v338 = vld [vmem:[%s270 + $0x40] sm:$0xff]
        %v339 = vld [vmem:[%s270 + $0x48] sm:$0xff]
        %v340 = vld [vmem:[%s270 + $0x50] sm:$0xff]
        %v341 = vld [vmem:[%s270 + $0x58] sm:$0xff]
        %v342 = vld [vmem:[%s270 + $0x60] sm:$0xff]
        %v343 = vld [vmem:[%s270 + $0x68] sm:$0xff]
        %v344 = vld [vmem:[%s270 + $0x70] sm:$0xff]
        %v345 = vld [vmem:[%s270 + $0x78] sm:$0xff]
        %v346 = vld [vmem:[%s270 + $0x80] sm:$0xff]
        %v347 = vld [vmem:[%s270 + $0x88] sm:$0xff]
        %v348 = vld [vmem:[%s270 + $0x90] sm:$0xff]
        %v349 = vld [vmem:[%s270 + $0x98] sm:$0xff]
        %v350 = vld [vmem:[%s270 + $0xa0] sm:$0xff]
        %v351 = vld [vmem:[%s270 + $0xa8] sm:$0xff]
        %v352 = vld [vmem:[%s270 + $0xb0] sm:$0xff]
        %v353 = vld [vmem:[%s270 + $0xb8] sm:$0xff]
        %v354 = vld [vmem:[%s270 + $0xc0] sm:$0xff]
        %v355 = vld [vmem:[%s270 + $0xc8] sm:$0xff]
        %v356 = vld [vmem:[%s270 + $0xd0] sm:$0xff]
        %v357 = vld [vmem:[%s270 + $0xd8] sm:$0xff]
        %v358 = vld [vmem:[%s270 + $0xe0] sm:$0xff]
        %v359 = vld [vmem:[%s270 + $0xe8] sm:$0xff]
        %v360 = vld [vmem:[%s270 + $0xf0] sm:$0xff]
        %v361 = vld [vmem:[%s270 + $0xf8] sm:$0xff]
        %v362 = vld [vmem:[%s270 + $0x100] sm:$0xff]
        %v363 = vld [vmem:[%s270 + $0x108] sm:$0xff]
        %v364 = vld [vmem:[%s270 + $0x110] sm:$0xff]
        %v365 = vld [vmem:[%s270 + $0x118] sm:$0xff]
        %v366 = vld [vmem:[%s270 + $0x120] sm:$0xff]
        %v367 = vld [vmem:[%s270 + $0x128] sm:$0xff]
        %v368 = vld [vmem:[%s270 + $0x130] sm:$0xff]
        %v369 = vld [vmem:[%s270 + $0x138] sm:$0xff]
        %v370 = vld [vmem:[%s270 + $0x140] sm:$0xff]
        %v371 = vld [vmem:[%s270 + $0x148] sm:$0xff]
        %v372 = vld [vmem:[%s270 + $0x150] sm:$0xff]
        %v373 = vld [vmem:[%s270 + $0x158] sm:$0xff]
        %v374 = vld [vmem:[%s270 + $0x160] sm:$0xff]
        %v375 = vld [vmem:[%s270 + $0x168] sm:$0xff]
        %v376 = vld [vmem:[%s270 + $0x170] sm:$0xff]
        %v377 = vld [vmem:[%s270 + $0x178] sm:$0xff]
        %v378 = vld [vmem:[%s270 + $0x180] sm:$0xff]
        %v379 = vld [vmem:[%s270 + $0x188] sm:$0xff]
        %v380 = vld [vmem:[%s270 + $0x190] sm:$0xff]
        %v381 = vld [vmem:[%s270 + $0x198] sm:$0xff]
        %v382 = vld [vmem:[%s270 + $0x1a0] sm:$0xff]
        %v383 = vld [vmem:[%s270 + $0x1a8] sm:$0xff]
        %v384 = vld [vmem:[%s270 + $0x1b0] sm:$0xff]
        %v385 = vld [vmem:[%s270 + $0x1b8] sm:$0xff]
        %v386 = vld [vmem:[%s270 + $0x1c0] sm:$0xff]
        %v387 = vld [vmem:[%s270 + $0x1c8] sm:$0xff]
        %v388 = vld [vmem:[%s270 + $0x1d0] sm:$0xff]
        %v389 = vld [vmem:[%s270 + $0x1d8] sm:$0xff]
        %v390 = vld [vmem:[%s270 + $0x1e0] sm:$0xff]
        %v391 = vld [vmem:[%s270 + $0x1e8] sm:$0xff]
        %v392 = vld [vmem:[%s270 + $0x1f0] sm:$0xff]
        %v393 = vld [vmem:[%s270 + $0x1f8] sm:$0xff]
        %v394 = vld [vmem:[%s270 + $0x200] sm:$0xff]
        %v395 = vld [vmem:[%s270 + $0x208] sm:$0xff]
        %v396 = vld [vmem:[%s270 + $0x210] sm:$0xff]
        %v397 = vld [vmem:[%s270 + $0x218] sm:$0xff]
        %v398 = vld [vmem:[%s270 + $0x220] sm:$0xff]
        %v399 = vld [vmem:[%s270 + $0x228] sm:$0xff]
        %v400 = vld [vmem:[%s270 + $0x230] sm:$0xff]
        %v401 = vld [vmem:[%s270 + $0x238] sm:$0xff]
        %v402 = vld [vmem:[%s270 + $0x240] sm:$0xff]
        %v403 = vld [vmem:[%s270 + $0x248] sm:$0xff]
        %v404 = vld [vmem:[%s270 + $0x250] sm:$0xff]
        %v405 = vld [vmem:[%s270 + $0x258] sm:$0xff]
        %v406 = vld [vmem:[%s270 + $0x260] sm:$0xff]
        %v407 = vld [vmem:[%s270 + $0x268] sm:$0xff]
        %v408 = vld [vmem:[%s270 + $0x270] sm:$0xff]
        %v409 = vld [vmem:[%s270 + $0x278] sm:$0xff]
        %v410 = vld [vmem:[%s270 + $0x280] sm:$0xff]
        %v411 = vld [vmem:[%s270 + $0x288] sm:$0xff]
        %v412 = vld [vmem:[%s270 + $0x290] sm:$0xff]
        %v413 = vld [vmem:[%s270 + $0x298] sm:$0xff]
        %v414 = vld [vmem:[%s270 + $0x2a0] sm:$0xff]
        %v415 = vld [vmem:[%s270 + $0x2a8] sm:$0xff]
        %v416 = vld [vmem:[%s270 + $0x2b0] sm:$0xff]
        %v417 = vld [vmem:[%s270 + $0x2b8] sm:$0xff]
        %v418 = vld [vmem:[%s270 + $0x2c0] sm:$0xff]
        %v419 = vld [vmem:[%s270 + $0x2c8] sm:$0xff]
        %v420 = vld [vmem:[%s270 + $0x2d0] sm:$0xff]
        %v421 = vld [vmem:[%s270 + $0x2d8] sm:$0xff]
        %v422 = vld [vmem:[%s270 + $0x2e0] sm:$0xff]
        %v423 = vld [vmem:[%s270 + $0x2e8] sm:$0xff]
        %v424 = vld [vmem:[%s270 + $0x2f0] sm:$0xff]
        %v425 = vld [vmem:[%s270 + $0x2f8] sm:$0xff]
        %v426 = vld [vmem:[%s270 + $0x300] sm:$0xff]
        %v427 = vld [vmem:[%s270 + $0x308] sm:$0xff]
        %v428 = vpack.c.bf16 %v337, %v330
        %v429 = vpack.c.bf16 %v338, %v331
        %v430 = vpack.c.bf16 %v339, %v332
        %v431 = vpack.c.bf16 %v340, %v333
        %v432 = vpack.c.bf16 %v341, %v334
        %v433 = vpack.c.bf16 %v342, %v335
        %v434 = vpack.c.bf16 %v343, %v336
        %v435 = vpack.c.bf16 %v351, %v344
        %v436 = vpack.c.bf16 %v352, %v345
        %v437 = vpack.c.bf16 %v353, %v346
        %v438 = vpack.c.bf16 %v354, %v347
        %v439 = vpack.c.bf16 %v355, %v348
        %v440 = vpack.c.bf16 %v356, %v349
        %v441 = vpack.c.bf16 %v357, %v350
        %v442 = vpack.c.bf16 %v365, %v358
        %v443 = vpack.c.bf16 %v366, %v359
        %v444 = vpack.c.bf16 %v367, %v360
        %v445 = vpack.c.bf16 %v368, %v361
        %v446 = vpack.c.bf16 %v369, %v362
        %v447 = vpack.c.bf16 %v370, %v363
        %v448 = vpack.c.bf16 %v371, %v364
        %v449 = vpack.c.bf16 %v379, %v372
        %v450 = vpack.c.bf16 %v380, %v373
        %v451 = vpack.c.bf16 %v381, %v374
        %v452 = vpack.c.bf16 %v382, %v375
        %v453 = vpack.c.bf16 %v383, %v376
        %v454 = vpack.c.bf16 %v384, %v377
        %v455 = vpack.c.bf16 %v385, %v378
        %v456 = vpack.c.bf16 %v393, %v386
        %v457 = vpack.c.bf16 %v394, %v387
        %v458 = vpack.c.bf16 %v395, %v388
        %v459 = vpack.c.bf16 %v396, %v389
        %v460 = vpack.c.bf16 %v397, %v390
        %v461 = vpack.c.bf16 %v398, %v391
        %v462 = vpack.c.bf16 %v399, %v392
        %v463 = vpack.c.bf16 %v407, %v400
        %v464 = vpack.c.bf16 %v408, %v401
        %v465 = vpack.c.bf16 %v409, %v402
        %v466 = vpack.c.bf16 %v410, %v403
        %v467 = vpack.c.bf16 %v411, %v404
        %v468 = vpack.c.bf16 %v412, %v405
        %v469 = vpack.c.bf16 %v413, %v406
        %v470 = vpack.c.bf16 %v421, %v414
        %v471 = vpack.c.bf16 %v422, %v415
        %v472 = vpack.c.bf16 %v423, %v416
        %v473 = vpack.c.bf16 %v424, %v417
        %v474 = vpack.c.bf16 %v425, %v418
        %v475 = vpack.c.bf16 %v426, %v419
        %v476 = vpack.c.bf16 %v427, %v420
        %v477 = vld [vmem:[#allocation5] sm:$0xf]
        %v478 = vld [vmem:[#allocation5 + $0x4] sm:$0xf]
        %v479 = vld [vmem:[#allocation5 + $0x8] sm:$0xf]
        %v480 = vld [vmem:[#allocation5 + $0xc] sm:$0xf]
        %v481 = vld [vmem:[#allocation5 + $0x10] sm:$0xf]
        %v482 = vld [vmem:[#allocation5 + $0x14] sm:$0xf]
        %v483 = vld [vmem:[#allocation5 + $0x18] sm:$0xf]
        %v484 = vld [vmem:[#allocation5 + $0x1c] sm:$0xf]
        %v485 = vld [vmem:[#allocation5 + $0x20] sm:$0xf]
        %v486 = vld [vmem:[#allocation5 + $0x24] sm:$0xf]
        %v487 = vld [vmem:[#allocation5 + $0x28] sm:$0xf]
        %v488 = vld [vmem:[#allocation5 + $0x2c] sm:$0xf]
        %v489 = vld [vmem:[#allocation5 + $0x30] sm:$0xf]
        %v490 = vld [vmem:[#allocation5 + $0x34] sm:$0xf]
        %v491 = vld [vmem:[#allocation5 + $0x38] sm:$0xf]
        %v492 = vld [vmem:[#allocation5 + $0x3c] sm:$0xf]
        %v493 = vld [vmem:[#allocation5 + $0x40] sm:$0xf]
        %v494 = vld [vmem:[#allocation5 + $0x44] sm:$0xf]
        %v495 = vld [vmem:[#allocation5 + $0x48] sm:$0xf]
        %v496 = vld [vmem:[#allocation5 + $0x4c] sm:$0xf]
        %v497 = vld [vmem:[#allocation5 + $0x50] sm:$0xf]
        %v498 = vld [vmem:[#allocation5 + $0x54] sm:$0xf]
        %v499 = vld [vmem:[#allocation5 + $0x58] sm:$0xf]
        %v500 = vld [vmem:[#allocation5 + $0x5c] sm:$0xf]
        %v501 = vld [vmem:[#allocation5 + $0x60] sm:$0xf]
        %v502 = vld [vmem:[#allocation5 + $0x64] sm:$0xf]
        %v503 = vld [vmem:[#allocation5 + $0x68] sm:$0xf]
        %v504 = vld [vmem:[#allocation5 + $0x6c] sm:$0xf]
        %v505 = vld [vmem:[#allocation5 + $0x70] sm:$0xf]
        %v506 = vld [vmem:[#allocation5 + $0x74] sm:$0xf]
        %v507 = vld [vmem:[#allocation5 + $0x78] sm:$0xf]
        %v508 = vld [vmem:[#allocation5 + $0x7c] sm:$0xf]
        %v509 = vld [vmem:[#allocation5 + $0x80] sm:$0xf]
        %v510 = vld [vmem:[#allocation5 + $0x84] sm:$0xf]
        %v511 = vld [vmem:[#allocation5 + $0x88] sm:$0xf]
        %v512 = vld [vmem:[#allocation5 + $0x8c] sm:$0xf]
        %v513 = vld [vmem:[#allocation5 + $0x90] sm:$0xf]
        %v514 = vld [vmem:[#allocation5 + $0x94] sm:$0xf]
        %v515 = vld [vmem:[#allocation5 + $0x98] sm:$0xf]
        %v516 = vld [vmem:[#allocation5 + $0x9c] sm:$0xf]
        %v517 = vld [vmem:[#allocation5 + $0xa0] sm:$0xf]
        %v518 = vld [vmem:[#allocation5 + $0xa4] sm:$0xf]
        %v519 = vld [vmem:[#allocation5 + $0xa8] sm:$0xf]
        %v520 = vld [vmem:[#allocation5 + $0xac] sm:$0xf]
        %v521 = vld [vmem:[#allocation5 + $0xb0] sm:$0xf]
        %v522 = vld [vmem:[#allocation5 + $0xb4] sm:$0xf]
        %v523 = vld [vmem:[#allocation5 + $0xb8] sm:$0xf]
        %v524 = vld [vmem:[#allocation5 + $0xbc] sm:$0xf]
        %v525 = vld [vmem:[#allocation5 + $0xc0] sm:$0xf]
        %v526 = vld [vmem:[#allocation5 + $0xc4] sm:$0xf]
        %v527 = vld [vmem:[#allocation5 + $0xc8] sm:$0xf]
        %v528 = vld [vmem:[#allocation5 + $0xcc] sm:$0xf]
        %v529 = vld [vmem:[#allocation5 + $0xd0] sm:$0xf]
        %v530 = vld [vmem:[#allocation5 + $0xd4] sm:$0xf]
        %v531 = vld [vmem:[#allocation5 + $0xd8] sm:$0xf]
        %v532 = vld [vmem:[#allocation5 + $0xdc] sm:$0xf]
        %v533 = vld [vmem:[#allocation5 + $0xe0] sm:$0xf]
        %v534 = vld [vmem:[#allocation5 + $0xe4] sm:$0xf]
        %v535 = vld [vmem:[#allocation5 + $0xe8] sm:$0xf]
        %v536 = vld [vmem:[#allocation5 + $0xec] sm:$0xf]
        %v537 = vld [vmem:[#allocation5 + $0xf0] sm:$0xf]
        %v538 = vld [vmem:[#allocation5 + $0xf4] sm:$0xf]
        %v539 = vld [vmem:[#allocation5 + $0xf8] sm:$0xf]
        %v540 = vld [vmem:[#allocation5 + $0xfc] sm:$0xf]
        %v541 = vld [vmem:[#allocation5 + $0x100] sm:$0xf]
        %v542 = vld [vmem:[#allocation5 + $0x104] sm:$0xf]
        %v543 = vld [vmem:[#allocation5 + $0x108] sm:$0xf]
        %v544 = vld [vmem:[#allocation5 + $0x10c] sm:$0xf]
        %v545 = vld [vmem:[#allocation5 + $0x110] sm:$0xf]
        %v546 = vld [vmem:[#allocation5 + $0x114] sm:$0xf]
        %v547 = vld [vmem:[#allocation5 + $0x118] sm:$0xf]
        %v548 = vld [vmem:[#allocation5 + $0x11c] sm:$0xf]
        %v549 = vld [vmem:[#allocation5 + $0x120] sm:$0xf]
        %v550 = vld [vmem:[#allocation5 + $0x124] sm:$0xf]
        %v551 = vld [vmem:[#allocation5 + $0x128] sm:$0xf]
        %v552 = vld [vmem:[#allocation5 + $0x12c] sm:$0xf]
        %v553 = vld [vmem:[#allocation5 + $0x130] sm:$0xf]
        %v554 = vld [vmem:[#allocation5 + $0x134] sm:$0xf]
        %v555 = vld [vmem:[#allocation5 + $0x138] sm:$0xf]
        %v556 = vld [vmem:[#allocation5 + $0x13c] sm:$0xf]
        %v557 = vld [vmem:[#allocation5 + $0x140] sm:$0xf]
        %v558 = vld [vmem:[#allocation5 + $0x144] sm:$0xf]
        %v559 = vld [vmem:[#allocation5 + $0x148] sm:$0xf]
        %v560 = vld [vmem:[#allocation5 + $0x14c] sm:$0xf]
        %v561 = vld [vmem:[#allocation5 + $0x150] sm:$0xf]
        %v562 = vld [vmem:[#allocation5 + $0x154] sm:$0xf]
        %v563 = vld [vmem:[#allocation5 + $0x158] sm:$0xf]
        %v564 = vld [vmem:[#allocation5 + $0x15c] sm:$0xf]
        %v565 = vld [vmem:[#allocation5 + $0x160] sm:$0xf]
        %v566 = vld [vmem:[#allocation5 + $0x164] sm:$0xf]
        %v567 = vld [vmem:[#allocation5 + $0x168] sm:$0xf]
        %v568 = vld [vmem:[#allocation5 + $0x16c] sm:$0xf]
        %v569 = vld [vmem:[#allocation5 + $0x170] sm:$0xf]
        %v570 = vld [vmem:[#allocation5 + $0x174] sm:$0xf]
        %v571 = vld [vmem:[#allocation5 + $0x178] sm:$0xf]
        %v572 = vld [vmem:[#allocation5 + $0x17c] sm:$0xf]
        %v573 = vld [vmem:[#allocation5 + $0x180] sm:$0xf]
        %v574 = vld [vmem:[#allocation5 + $0x184] sm:$0xf]
        %v575 = vld [vmem:[#allocation10] sm:$0x1]
        %v576 = vperm.slane %v575, 0
        %v675 = vunpack.c.l.b16 %v477
        %v676 = vunpack.c.l.b16 %v478
        %v677 = vunpack.c.l.b16 %v479
        %v678 = vunpack.c.l.b16 %v480
        %v679 = vunpack.c.l.b16 %v481
        %v680 = vunpack.c.l.b16 %v482
        %v681 = vunpack.c.l.b16 %v483
        %v682 = vunpack.c.l.b16 %v484
        %v683 = vunpack.c.l.b16 %v485
        %v684 = vunpack.c.l.b16 %v486
        %v685 = vunpack.c.l.b16 %v487
        %v686 = vunpack.c.l.b16 %v488
        %v687 = vunpack.c.l.b16 %v489
        %v688 = vunpack.c.l.b16 %v490
        %v689 = vunpack.c.l.b16 %v491
        %v690 = vunpack.c.l.b16 %v492
        %v691 = vunpack.c.l.b16 %v493
        %v692 = vunpack.c.l.b16 %v494
        %v693 = vunpack.c.l.b16 %v495
        %v694 = vunpack.c.l.b16 %v496
        %v695 = vunpack.c.l.b16 %v497
        %v696 = vunpack.c.l.b16 %v498
        %v697 = vunpack.c.l.b16 %v499
        %v698 = vunpack.c.l.b16 %v500
        %v699 = vunpack.c.l.b16 %v501
        %v700 = vunpack.c.l.b16 %v502
        %v701 = vunpack.c.l.b16 %v503
        %v702 = vunpack.c.l.b16 %v504
        %v703 = vunpack.c.l.b16 %v505
        %v704 = vunpack.c.l.b16 %v506
        %v705 = vunpack.c.l.b16 %v507
        %v706 = vunpack.c.l.b16 %v508
        %v707 = vunpack.c.l.b16 %v509
        %v708 = vunpack.c.l.b16 %v510
        %v709 = vunpack.c.l.b16 %v511
        %v710 = vunpack.c.l.b16 %v512
        %v711 = vunpack.c.l.b16 %v513
        %v712 = vunpack.c.l.b16 %v514
        %v713 = vunpack.c.l.b16 %v515
        %v714 = vunpack.c.l.b16 %v516
        %v715 = vunpack.c.l.b16 %v517
        %v716 = vunpack.c.l.b16 %v518
        %v717 = vunpack.c.l.b16 %v519
        %v718 = vunpack.c.l.b16 %v520
        %v719 = vunpack.c.l.b16 %v521
        %v720 = vunpack.c.l.b16 %v522
        %v721 = vunpack.c.l.b16 %v523
        %v722 = vunpack.c.l.b16 %v524
        %v723 = vunpack.c.l.b16 %v525
        %v724 = vunpack.c.l.b16 %v526
        %v725 = vunpack.c.l.b16 %v527
        %v726 = vunpack.c.l.b16 %v528
        %v727 = vunpack.c.l.b16 %v529
        %v728 = vunpack.c.l.b16 %v530
        %v729 = vunpack.c.l.b16 %v531
        %v730 = vunpack.c.l.b16 %v532
        %v731 = vunpack.c.l.b16 %v533
        %v732 = vunpack.c.l.b16 %v534
        %v733 = vunpack.c.l.b16 %v535
        %v734 = vunpack.c.l.b16 %v536
        %v735 = vunpack.c.l.b16 %v537
        %v736 = vunpack.c.l.b16 %v538
        %v737 = vunpack.c.l.b16 %v539
        %v738 = vunpack.c.l.b16 %v540
        %v739 = vunpack.c.l.b16 %v541
        %v740 = vunpack.c.l.b16 %v542
        %v741 = vunpack.c.l.b16 %v543
        %v742 = vunpack.c.l.b16 %v544
        %v743 = vunpack.c.l.b16 %v545
        %v744 = vunpack.c.l.b16 %v546
        %v745 = vunpack.c.l.b16 %v547
        %v746 = vunpack.c.l.b16 %v548
        %v747 = vunpack.c.l.b16 %v549
        %v748 = vunpack.c.l.b16 %v550
        %v749 = vunpack.c.l.b16 %v551
        %v750 = vunpack.c.l.b16 %v552
        %v751 = vunpack.c.l.b16 %v553
        %v752 = vunpack.c.l.b16 %v554
        %v753 = vunpack.c.l.b16 %v555
        %v754 = vunpack.c.l.b16 %v556
        %v755 = vunpack.c.l.b16 %v557
        %v756 = vunpack.c.l.b16 %v558
        %v757 = vunpack.c.l.b16 %v559
        %v758 = vunpack.c.l.b16 %v560
        %v759 = vunpack.c.l.b16 %v561
        %v760 = vunpack.c.l.b16 %v562
        %v761 = vunpack.c.l.b16 %v563
        %v762 = vunpack.c.l.b16 %v564
        %v763 = vunpack.c.l.b16 %v565
        %v764 = vunpack.c.l.b16 %v566
        %v765 = vunpack.c.l.b16 %v567
        %v766 = vunpack.c.l.b16 %v568
        %v767 = vunpack.c.l.b16 %v569
        %v768 = vunpack.c.l.b16 %v570
        %v769 = vunpack.c.l.b16 %v571
        %v770 = vunpack.c.l.b16 %v572
        %v771 = vunpack.c.l.b16 %v573
        %v772 = vunpack.c.l.b16 %v574
        %v773 = vpack.c.b16 %v676, %v675
        %v774 = vpack.c.b16 %v678, %v677
        %v775 = vpack.c.b16 %v680, %v679
        %v776 = vpack.c.b16 %v682, %v681
        %v777 = vpack.c.b16 %v684, %v683
        %v778 = vpack.c.b16 %v686, %v685
        %v779 = vpack.c.b16 %v688, %v687
        %v780 = vpack.c.b16 %v690, %v689
        %v781 = vpack.c.b16 %v692, %v691
        %v782 = vpack.c.b16 %v694, %v693
        %v783 = vpack.c.b16 %v696, %v695
        %v784 = vpack.c.b16 %v698, %v697
        %v785 = vpack.c.b16 %v700, %v699
        %v786 = vpack.c.b16 %v702, %v701
        %v787 = vpack.c.b16 %v704, %v703
        %v788 = vpack.c.b16 %v706, %v705
        %v789 = vpack.c.b16 %v708, %v707
        %v790 = vpack.c.b16 %v710, %v709
        %v791 = vpack.c.b16 %v712, %v711
        %v792 = vpack.c.b16 %v714, %v713
        %v793 = vpack.c.b16 %v716, %v715
        %v794 = vpack.c.b16 %v718, %v717
        %v795 = vpack.c.b16 %v720, %v719
        %v796 = vpack.c.b16 %v722, %v721
        %v797 = vpack.c.b16 %v724, %v723
        %v798 = vpack.c.b16 %v726, %v725
        %v799 = vpack.c.b16 %v728, %v727
        %v800 = vpack.c.b16 %v730, %v729
        %v801 = vpack.c.b16 %v732, %v731
        %v802 = vpack.c.b16 %v734, %v733
        %v803 = vpack.c.b16 %v736, %v735
        %v804 = vpack.c.b16 %v738, %v737
        %v805 = vpack.c.b16 %v740, %v739
        %v806 = vpack.c.b16 %v742, %v741
        %v807 = vpack.c.b16 %v744, %v743
        %v808 = vpack.c.b16 %v746, %v745
        %v809 = vpack.c.b16 %v748, %v747
        %v810 = vpack.c.b16 %v750, %v749
        %v811 = vpack.c.b16 %v752, %v751
        %v812 = vpack.c.b16 %v754, %v753
        %v813 = vpack.c.b16 %v756, %v755
        %v814 = vpack.c.b16 %v758, %v757
        %v815 = vpack.c.b16 %v760, %v759
        %v816 = vpack.c.b16 %v762, %v761
        %v817 = vpack.c.b16 %v764, %v763
        %v818 = vpack.c.b16 %v766, %v765
        %v819 = vpack.c.b16 %v768, %v767
        %v820 = vpack.c.b16 %v770, %v769
        %v821 = vpack.c.b16 %v772, %v771
        %vm871 = vcmask 130048
        %v873 = vsel %vm871, %v434, 0
        %v876 = vsel %vm871, %v441, 0
        %v879 = vsel %vm871, %v448, 0
        %v882 = vsel %vm871, %v455, 0
        %v885 = vsel %vm871, %v462, 0
        %v888 = vsel %vm871, %v469, 0
        %v891 = vsel %vm871, %v476, 0
        %893 = vmatpush.bf16.msra.mxu0 %v780
        %894 = vmatpush.bf16.msra.mxu0 %v779
        %895 = vmatpush.bf16.msra.mxu0 %v778
        %896 = vmatpush.bf16.msra.mxu0 %v777
        %897 = vmatpush.bf16.msra.mxu0 %v776
        %898 = vmatpush.bf16.msra.mxu0 %v775
        %899 = vmatpush.bf16.msra.mxu0 %v774
        %900 = vmatpush.bf16.msra.mxu0 %v773
        %901 = vmatmul.bf16.gmra.mxu0 %v428
        %v902 = vpop.f32.mrf.mxu0
        %v903 = vadd.f32 %v576, %v902
        %v904 = vpop.f32.mrf.mxu0
        %v905 = vadd.f32 %v576, %v904
        %906 = vmatmul.bf16.gmra.mxu0 %v435
        %v907 = vpop.f32.mrf.mxu0
        %v908 = vadd.f32 %v576, %v907
        %v909 = vpop.f32.mrf.mxu0
        %v910 = vadd.f32 %v576, %v909
        %911 = vmatmul.bf16.gmra.mxu0 %v442
        %v912 = vpop.f32.mrf.mxu0
        %v913 = vadd.f32 %v576, %v912
        %v914 = vpop.f32.mrf.mxu0
        %v915 = vadd.f32 %v576, %v914
        %916 = vmatmul.bf16.gmra.mxu0 %v449
        %v917 = vpop.f32.mrf.mxu0
        %v918 = vadd.f32 %v576, %v917
        %v919 = vpop.f32.mrf.mxu0
        %v920 = vadd.f32 %v576, %v919
        %921 = vmatmul.bf16.gmra.mxu0 %v456
        %v922 = vpop.f32.mrf.mxu0
        %v923 = vadd.f32 %v576, %v922
        %v924 = vpop.f32.mrf.mxu0
        %v925 = vadd.f32 %v576, %v924
        %926 = vmatmul.bf16.gmra.mxu0 %v463
        %v927 = vpop.f32.mrf.mxu0
        %v928 = vadd.f32 %v576, %v927
        %v929 = vpop.f32.mrf.mxu0
        %v930 = vadd.f32 %v576, %v929
        %931 = vmatmul.bf16.gmra.mxu0 %v470
        %v932 = vpop.f32.mrf.mxu0
        %v933 = vadd.f32 %v576, %v932
        %v934 = vpop.f32.mrf.mxu0
        %v935 = vadd.f32 %v576, %v934
        %936 = vdwg.mxu0
        %937 = vmatpush.bf16.msra.mxu0 %v788
        %938 = vmatpush.bf16.msra.mxu0 %v787
        %939 = vmatpush.bf16.msra.mxu0 %v786
        %940 = vmatpush.bf16.msra.mxu0 %v785
        %941 = vmatpush.bf16.msra.mxu0 %v784
        %942 = vmatpush.bf16.msra.mxu0 %v783
        %943 = vmatpush.bf16.msra.mxu0 %v782
        %944 = vmatpush.bf16.msra.mxu0 %v781
        %945 = vmatmul.bf16.gmra.mxu0 %v429
        %v946 = vpop.f32.mrf.mxu0
        %v947 = vadd.f32 %v903, %v946
        %v948 = vpop.f32.mrf.mxu0
        %v949 = vadd.f32 %v905, %v948
        %950 = vmatmul.bf16.gmra.mxu0 %v436
        %v951 = vpop.f32.mrf.mxu0
        %v952 = vadd.f32 %v908, %v951
        %v953 = vpop.f32.mrf.mxu0
        %v954 = vadd.f32 %v910, %v953
        %955 = vmatmul.bf16.gmra.mxu0 %v443
        %v956 = vpop.f32.mrf.mxu0
        %v957 = vadd.f32 %v913, %v956
        %v958 = vpop.f32.mrf.mxu0
        %v959 = vadd.f32 %v915, %v958
        %960 = vmatmul.bf16.gmra.mxu0 %v450
        %v961 = vpop.f32.mrf.mxu0
        %v962 = vadd.f32 %v918, %v961
        %v963 = vpop.f32.mrf.mxu0
        %v964 = vadd.f32 %v920, %v963
        %965 = vmatmul.bf16.gmra.mxu0 %v457
        %v966 = vpop.f32.mrf.mxu0
        %v967 = vadd.f32 %v923, %v966
        %v968 = vpop.f32.mrf.mxu0
        %v969 = vadd.f32 %v925, %v968
        %970 = vmatmul.bf16.gmra.mxu0 %v464
        %v971 = vpop.f32.mrf.mxu0
        %v972 = vadd.f32 %v928, %v971
        %v973 = vpop.f32.mrf.mxu0
        %v974 = vadd.f32 %v930, %v973
        %975 = vmatmul.bf16.gmra.mxu0 %v471
        %v976 = vpop.f32.mrf.mxu0
        %v977 = vadd.f32 %v933, %v976
        %v978 = vpop.f32.mrf.mxu0
        %v979 = vadd.f32 %v935, %v978
        %980 = vdwg.mxu0
        %981 = vmatpush.bf16.msra.mxu0 %v796
        %982 = vmatpush.bf16.msra.mxu0 %v795
        %983 = vmatpush.bf16.msra.mxu0 %v794
        %984 = vmatpush.bf16.msra.mxu0 %v793
        %985 = vmatpush.bf16.msra.mxu0 %v792
        %986 = vmatpush.bf16.msra.mxu0 %v791
        %987 = vmatpush.bf16.msra.mxu0 %v790
        %988 = vmatpush.bf16.msra.mxu0 %v789
        %989 = vmatmul.bf16.gmra.mxu0 %v430
        %v990 = vpop.f32.mrf.mxu0
        %v991 = vadd.f32 %v947, %v990
        %v992 = vpop.f32.mrf.mxu0
        %v993 = vadd.f32 %v949, %v992
        %994 = vmatmul.bf16.gmra.mxu0 %v437
        %v995 = vpop.f32.mrf.mxu0
        %v996 = vadd.f32 %v952, %v995
        %v997 = vpop.f32.mrf.mxu0
        %v998 = vadd.f32 %v954, %v997
        %999 = vmatmul.bf16.gmra.mxu0 %v444
        %v1000 = vpop.f32.mrf.mxu0
        %v1001 = vadd.f32 %v957, %v1000
        %v1002 = vpop.f32.mrf.mxu0
        %v1003 = vadd.f32 %v959, %v1002
        %1004 = vmatmul.bf16.gmra.mxu0 %v451
        %v1005 = vpop.f32.mrf.mxu0
        %v1006 = vadd.f32 %v962, %v1005
        %v1007 = vpop.f32.mrf.mxu0
        %v1008 = vadd.f32 %v964, %v1007
        %1009 = vmatmul.bf16.gmra.mxu0 %v458
        %v1010 = vpop.f32.mrf.mxu0
        %v1011 = vadd.f32 %v967, %v1010
        %v1012 = vpop.f32.mrf.mxu0
        %v1013 = vadd.f32 %v969, %v1012
        %1014 = vmatmul.bf16.gmra.mxu0 %v465
        %v1015 = vpop.f32.mrf.mxu0
        %v1016 = vadd.f32 %v972, %v1015
        %v1017 = vpop.f32.mrf.mxu0
        %v1018 = vadd.f32 %v974, %v1017
        %1019 = vmatmul.bf16.gmra.mxu0 %v472
        %v1020 = vpop.f32.mrf.mxu0
        %v1021 = vadd.f32 %v977, %v1020
        %v1022 = vpop.f32.mrf.mxu0
        %v1023 = vadd.f32 %v979, %v1022
        %1024 = vdwg.mxu0
        %1025 = vmatpush.bf16.msra.mxu0 %v804
        %1026 = vmatpush.bf16.msra.mxu0 %v803
        %1027 = vmatpush.bf16.msra.mxu0 %v802
        %1028 = vmatpush.bf16.msra.mxu0 %v801
        %1029 = vmatpush.bf16.msra.mxu0 %v800
        %1030 = vmatpush.bf16.msra.mxu0 %v799
        %1031 = vmatpush.bf16.msra.mxu0 %v798
        %1032 = vmatpush.bf16.msra.mxu0 %v797
        %1033 = vmatmul.bf16.gmra.mxu0 %v431
        %v1034 = vpop.f32.mrf.mxu0
        %v1035 = vadd.f32 %v991, %v1034
        %v1036 = vpop.f32.mrf.mxu0
        %v1037 = vadd.f32 %v993, %v1036
        %1038 = vmatmul.bf16.gmra.mxu0 %v438
        %v1039 = vpop.f32.mrf.mxu0
        %v1040 = vadd.f32 %v996, %v1039
        %v1041 = vpop.f32.mrf.mxu0
        %v1042 = vadd.f32 %v998, %v1041
        %1043 = vmatmul.bf16.gmra.mxu0 %v445
        %v1044 = vpop.f32.mrf.mxu0
        %v1045 = vadd.f32 %v1001, %v1044
        %v1046 = vpop.f32.mrf.mxu0
        %v1047 = vadd.f32 %v1003, %v1046
        %1048 = vmatmul.bf16.gmra.mxu0 %v452
        %v1049 = vpop.f32.mrf.mxu0
        %v1050 = vadd.f32 %v1006, %v1049
        %v1051 = vpop.f32.mrf.mxu0
        %v1052 = vadd.f32 %v1008, %v1051
        %1053 = vmatmul.bf16.gmra.mxu0 %v459
        %v1054 = vpop.f32.mrf.mxu0
        %v1055 = vadd.f32 %v1011, %v1054
        %v1056 = vpop.f32.mrf.mxu0
        %v1057 = vadd.f32 %v1013, %v1056
        %1058 = vmatmul.bf16.gmra.mxu0 %v466
        %v1059 = vpop.f32.mrf.mxu0
        %v1060 = vadd.f32 %v1016, %v1059
        %v1061 = vpop.f32.mrf.mxu0
        %v1062 = vadd.f32 %v1018, %v1061
        %1063 = vmatmul.bf16.gmra.mxu0 %v473
        %v1064 = vpop.f32.mrf.mxu0
        %v1065 = vadd.f32 %v1021, %v1064
        %v1066 = vpop.f32.mrf.mxu0
        %v1067 = vadd.f32 %v1023, %v1066
        %1068 = vdwg.mxu0
        %1069 = vmatpush.bf16.msra.mxu0 %v812
        %1070 = vmatpush.bf16.msra.mxu0 %v811
        %1071 = vmatpush.bf16.msra.mxu0 %v810
        %1072 = vmatpush.bf16.msra.mxu0 %v809
        %1073 = vmatpush.bf16.msra.mxu0 %v808
        %1074 = vmatpush.bf16.msra.mxu0 %v807
        %1075 = vmatpush.bf16.msra.mxu0 %v806
        %1076 = vmatpush.bf16.msra.mxu0 %v805
        %1077 = vmatmul.bf16.gmra.mxu0 %v432
        %v1078 = vpop.f32.mrf.mxu0
        %v1079 = vadd.f32 %v1035, %v1078
        %v1080 = vpop.f32.mrf.mxu0
        %v1081 = vadd.f32 %v1037, %v1080
        %1082 = vmatmul.bf16.gmra.mxu0 %v439
        %v1083 = vpop.f32.mrf.mxu0
        %v1084 = vadd.f32 %v1040, %v1083
        %v1085 = vpop.f32.mrf.mxu0
        %v1086 = vadd.f32 %v1042, %v1085
        %1087 = vmatmul.bf16.gmra.mxu0 %v446
        %v1088 = vpop.f32.mrf.mxu0
        %v1089 = vadd.f32 %v1045, %v1088
        %v1090 = vpop.f32.mrf.mxu0
        %v1091 = vadd.f32 %v1047, %v1090
        %1092 = vmatmul.bf16.gmra.mxu0 %v453
        %v1093 = vpop.f32.mrf.mxu0
        %v1094 = vadd.f32 %v1050, %v1093
        %v1095 = vpop.f32.mrf.mxu0
        %v1096 = vadd.f32 %v1052, %v1095
        %1097 = vmatmul.bf16.gmra.mxu0 %v460
        %v1098 = vpop.f32.mrf.mxu0
        %v1099 = vadd.f32 %v1055, %v1098
        %v1100 = vpop.f32.mrf.mxu0
        %v1101 = vadd.f32 %v1057, %v1100
        %1102 = vmatmul.bf16.gmra.mxu0 %v467
        %v1103 = vpop.f32.mrf.mxu0
        %v1104 = vadd.f32 %v1060, %v1103
        %v1105 = vpop.f32.mrf.mxu0
        %v1106 = vadd.f32 %v1062, %v1105
        %1107 = vmatmul.bf16.gmra.mxu0 %v474
        %v1108 = vpop.f32.mrf.mxu0
        %v1109 = vadd.f32 %v1065, %v1108
        %v1110 = vpop.f32.mrf.mxu0
        %v1111 = vadd.f32 %v1067, %v1110
        %1112 = vdwg.mxu0
        %1113 = vmatpush.bf16.msra.mxu0 %v820
        %1114 = vmatpush.bf16.msra.mxu0 %v819
        %1115 = vmatpush.bf16.msra.mxu0 %v818
        %1116 = vmatpush.bf16.msra.mxu0 %v817
        %1117 = vmatpush.bf16.msra.mxu0 %v816
        %1118 = vmatpush.bf16.msra.mxu0 %v815
        %1119 = vmatpush.bf16.msra.mxu0 %v814
        %1120 = vmatpush.bf16.msra.mxu0 %v813
        %1121 = vmatmul.bf16.gmra.mxu0 %v433
        %v1122 = vpop.f32.mrf.mxu0
        %v1123 = vadd.f32 %v1079, %v1122
        %v1124 = vpop.f32.mrf.mxu0
        %v1125 = vadd.f32 %v1081, %v1124
        %1126 = vmatmul.bf16.gmra.mxu0 %v440
        %v1127 = vpop.f32.mrf.mxu0
        %v1128 = vadd.f32 %v1084, %v1127
        %v1129 = vpop.f32.mrf.mxu0
        %v1130 = vadd.f32 %v1086, %v1129
        %1131 = vmatmul.bf16.gmra.mxu0 %v447
        %v1132 = vpop.f32.mrf.mxu0
        %v1133 = vadd.f32 %v1089, %v1132
        %v1134 = vpop.f32.mrf.mxu0
        %v1135 = vadd.f32 %v1091, %v1134
        %1136 = vmatmul.bf16.gmra.mxu0 %v454
        %v1137 = vpop.f32.mrf.mxu0
        %v1138 = vadd.f32 %v1094, %v1137
        %v1139 = vpop.f32.mrf.mxu0
        %v1140 = vadd.f32 %v1096, %v1139
        %1141 = vmatmul.bf16.gmra.mxu0 %v461
        %v1142 = vpop.f32.mrf.mxu0
        %v1143 = vadd.f32 %v1099, %v1142
        %v1144 = vpop.f32.mrf.mxu0
        %v1145 = vadd.f32 %v1101, %v1144
        %1146 = vmatmul.bf16.gmra.mxu0 %v468
        %v1147 = vpop.f32.mrf.mxu0
        %v1148 = vadd.f32 %v1104, %v1147
        %v1149 = vpop.f32.mrf.mxu0
        %v1150 = vadd.f32 %v1106, %v1149
        %1151 = vmatmul.bf16.gmra.mxu0 %v475
        %v1152 = vpop.f32.mrf.mxu0
        %v1153 = vadd.f32 %v1109, %v1152
        %v1154 = vpop.f32.mrf.mxu0
        %v1155 = vadd.f32 %v1111, %v1154
        %1156 = vdwg.mxu0
        %1157 = vmatpush.bf16.msra.mxu0 0
        %1158 = vmatpush.bf16.msra.mxu0 0
        %1159 = vmatpush.bf16.msra.mxu0 0
        %1160 = vmatpush.bf16.msra.mxu0 0
        %1161 = vmatpush.bf16.msra.mxu0 0
        %1162 = vmatpush.bf16.msra.mxu0 0
        %1163 = vmatpush.bf16.msra.mxu0 0
        %1164 = vmatpush.bf16.msra.mxu0 %v821
        %1165 = vmatmul.bf16.gmra.mxu0 %v873
        %v1166 = vpop.f32.mrf.mxu0
        %v1167 = vadd.f32 %v1123, %v1166
        %v1168 = vpop.f32.mrf.mxu0
        %v1169 = vadd.f32 %v1125, %v1168
        %1170 = vmatmul.bf16.gmra.mxu0 %v876
        %v1171 = vpop.f32.mrf.mxu0
        %v1172 = vadd.f32 %v1128, %v1171
        %v1173 = vpop.f32.mrf.mxu0
        %v1174 = vadd.f32 %v1130, %v1173
        %1175 = vmatmul.bf16.gmra.mxu0 %v879
        %v1176 = vpop.f32.mrf.mxu0
        %v1177 = vadd.f32 %v1133, %v1176
        %v1178 = vpop.f32.mrf.mxu0
        %v1179 = vadd.f32 %v1135, %v1178
        %1180 = vmatmul.bf16.gmra.mxu0 %v882
        %v1181 = vpop.f32.mrf.mxu0
        %v1182 = vadd.f32 %v1138, %v1181
        %v1183 = vpop.f32.mrf.mxu0
        %v1184 = vadd.f32 %v1140, %v1183
        %1185 = vmatmul.bf16.gmra.mxu0 %v885
        %v1186 = vpop.f32.mrf.mxu0
        %v1187 = vadd.f32 %v1143, %v1186
        %v1188 = vpop.f32.mrf.mxu0
        %v1189 = vadd.f32 %v1145, %v1188
        %1190 = vmatmul.bf16.gmra.mxu0 %v888
        %v1191 = vpop.f32.mrf.mxu0
        %v1192 = vadd.f32 %v1148, %v1191
        %v1193 = vpop.f32.mrf.mxu0
        %v1194 = vadd.f32 %v1150, %v1193
        %1195 = vmatmul.bf16.gmra.mxu0 %v891
        %v1196 = vpop.f32.mrf.mxu0
        %v1197 = vadd.f32 %v1153, %v1196
        %v1198 = vpop.f32.mrf.mxu0
        %v1199 = vadd.f32 %v1155, %v1198
        %1200 = vdwg.mxu0
        %v1201 = vmax.f32 %v1167, 0.0
        %v1202 = vmax.f32 %v1169, 0.0
        %v1203 = vmax.f32 %v1172, 0.0
        %v1204 = vmax.f32 %v1174, 0.0
        %v1205 = vmax.f32 %v1177, 0.0
        %v1206 = vmax.f32 %v1179, 0.0
        %v1207 = vmax.f32 %v1182, 0.0
        %v1208 = vmax.f32 %v1184, 0.0
        %v1209 = vmax.f32 %v1187, 0.0
        %v1210 = vmax.f32 %v1189, 0.0
        %v1211 = vmax.f32 %v1192, 0.0
        %v1212 = vmax.f32 %v1194, 0.0
        %v1213 = vmax.f32 %v1197, 0.0
        %v1214 = vmax.f32 %v1199, 0.0
        %v1215 = vpack.c.bf16 %v1202, %v1201
        %v1216 = vpack.c.bf16 %v1204, %v1203
        %v1217 = vpack.c.bf16 %v1206, %v1205
        %v1218 = vpack.c.bf16 %v1208, %v1207
        %v1219 = vpack.c.bf16 %v1210, %v1209
        %v1220 = vpack.c.bf16 %v1212, %v1211
        %v1221 = vpack.c.bf16 %v1214, %v1213
        %v1222 = vld [vmem:[#allocation7] sm:$0xf]
        %v1223 = vld [vmem:[#allocation7 + $0x4] sm:$0xf]
        %v1224 = vld [vmem:[#allocation7 + $0x8] sm:$0xf]
        %v1225 = vld [vmem:[#allocation7 + $0xc] sm:$0xf]
        %v1226 = vld [vmem:[#allocation7 + $0x10] sm:$0xf]
        %v1227 = vld [vmem:[#allocation7 + $0x14] sm:$0xf]
        %v1228 = vld [vmem:[#allocation7 + $0x18] sm:$0xf]
        %v1229 = vld [vmem:[#allocation7 + $0x1c] sm:$0xf]
        %v1230 = vld [vmem:[#allocation7 + $0x20] sm:$0xf]
        %v1231 = vld [vmem:[#allocation7 + $0x24] sm:$0xf]
        %v1232 = vld [vmem:[#allocation7 + $0x28] sm:$0xf]
        %v1233 = vld [vmem:[#allocation7 + $0x2c] sm:$0xf]
        %v1234 = vld [vmem:[#allocation7 + $0x30] sm:$0xf]
        %v1235 = vld [vmem:[#allocation7 + $0x34] sm:$0xf]
        %v1236 = vld [vmem:[#allocation7 + $0x38] sm:$0xf]
        %v1237 = vld [vmem:[#allocation7 + $0x3c] sm:$0xf]
        %v1238 = vld [vmem:[#allocation10 + $0x1] sm:$0x1]
        %v1239 = vperm.slane %v1238, 0
        %v1256 = vunpack.c.l.b16 %v1222
        %v1257 = vunpack.c.l.b16 %v1223
        %v1258 = vunpack.c.l.b16 %v1224
        %v1259 = vunpack.c.l.b16 %v1225
        %v1260 = vunpack.c.l.b16 %v1226
        %v1261 = vunpack.c.l.b16 %v1227
        %v1262 = vunpack.c.l.b16 %v1228
        %v1263 = vunpack.c.l.b16 %v1229
        %v1264 = vunpack.c.l.b16 %v1230
        %v1265 = vunpack.c.l.b16 %v1231
        %v1266 = vunpack.c.l.b16 %v1232
        %v1267 = vunpack.c.l.b16 %v1233
        %v1268 = vunpack.c.l.b16 %v1234
        %v1269 = vunpack.c.l.b16 %v1235
        %v1270 = vunpack.c.l.b16 %v1236
        %v1271 = vunpack.c.l.b16 %v1237
        %v1272 = vpack.c.b16 %v1257, %v1256
        %v1273 = vpack.c.b16 %v1259, %v1258
        %v1274 = vpack.c.b16 %v1261, %v1260
        %v1275 = vpack.c.b16 %v1263, %v1262
        %v1276 = vpack.c.b16 %v1265, %v1264
        %v1277 = vpack.c.b16 %v1267, %v1266
        %v1278 = vpack.c.b16 %v1269, %v1268
        %v1279 = vpack.c.b16 %v1271, %v1270
        %1288 = vmatpush.bf16.msra.mxu0 %v1279
        %1289 = vmatpush.bf16.msra.mxu0 %v1278
        %1290 = vmatpush.bf16.msra.mxu0 %v1277
        %1291 = vmatpush.bf16.msra.mxu0 %v1276
        %1292 = vmatpush.bf16.msra.mxu0 %v1275
        %1293 = vmatpush.bf16.msra.mxu0 %v1274
        %1294 = vmatpush.bf16.msra.mxu0 %v1273
        %1295 = vmatpush.bf16.msra.mxu0 %v1272
        %1296 = vmatmul.bf16.gmra.mxu0 %v1215
        %v1297 = vpop.f32.mrf.mxu0
        %v1298 = vadd.f32 %v1239, %v1297
        %v1299 = vpop.f32.mrf.mxu0
        %v1300 = vadd.f32 %v1239, %v1299
        %1301 = vmatmul.bf16.gmra.mxu0 %v1216
        %v1302 = vpop.f32.mrf.mxu0
        %v1303 = vadd.f32 %v1239, %v1302
        %v1304 = vpop.f32.mrf.mxu0
        %v1305 = vadd.f32 %v1239, %v1304
        %1306 = vmatmul.bf16.gmra.mxu0 %v1217
        %v1307 = vpop.f32.mrf.mxu0
        %v1308 = vadd.f32 %v1239, %v1307
        %v1309 = vpop.f32.mrf.mxu0
        %v1310 = vadd.f32 %v1239, %v1309
        %1311 = vmatmul.bf16.gmra.mxu0 %v1218
        %v1312 = vpop.f32.mrf.mxu0
        %v1313 = vadd.f32 %v1239, %v1312
        %v1314 = vpop.f32.mrf.mxu0
        %v1315 = vadd.f32 %v1239, %v1314
        %1316 = vmatmul.bf16.gmra.mxu0 %v1219
        %v1317 = vpop.f32.mrf.mxu0
        %v1318 = vadd.f32 %v1239, %v1317
        %v1319 = vpop.f32.mrf.mxu0
        %v1320 = vadd.f32 %v1239, %v1319
        %1321 = vmatmul.bf16.gmra.mxu0 %v1220
        %v1322 = vpop.f32.mrf.mxu0
        %v1323 = vadd.f32 %v1239, %v1322
        %v1324 = vpop.f32.mrf.mxu0
        %v1325 = vadd.f32 %v1239, %v1324
        %1326 = vmatmul.bf16.gmra.mxu0 %v1221
        %v1327 = vpop.f32.mrf.mxu0
        %v1328 = vadd.f32 %v1239, %v1327
        %v1329 = vpop.f32.mrf.mxu0
        %v1330 = vadd.f32 %v1239, %v1329
        %1331 = vdwg.mxu0
        %v1332 = vmax.f32 %v1298, 0.0
        %v1333 = vmax.f32 %v1300, 0.0
        %v1334 = vmax.f32 %v1303, 0.0
        %v1335 = vmax.f32 %v1305, 0.0
        %v1336 = vmax.f32 %v1308, 0.0
        %v1337 = vmax.f32 %v1310, 0.0
        %v1338 = vmax.f32 %v1313, 0.0
        %v1339 = vmax.f32 %v1315, 0.0
        %v1340 = vmax.f32 %v1318, 0.0
        %v1341 = vmax.f32 %v1320, 0.0
        %v1342 = vmax.f32 %v1323, 0.0
        %v1343 = vmax.f32 %v1325, 0.0
        %v1344 = vmax.f32 %v1328, 0.0
        %v1345 = vmax.f32 %v1330, 0.0
        %v1346 = vpack.c.bf16 %v1333, %v1332
        %v1347 = vpack.c.bf16 %v1335, %v1334
        %v1348 = vpack.c.bf16 %v1337, %v1336
        %v1349 = vpack.c.bf16 %v1339, %v1338
        %v1350 = vpack.c.bf16 %v1341, %v1340
        %v1351 = vpack.c.bf16 %v1343, %v1342
        %v1352 = vpack.c.bf16 %v1345, %v1344
        %v1353 = vld [vmem:[#allocation8] sm:$0xf]
        %v1354 = vld [vmem:[#allocation8 + $0x4] sm:$0xf]
        %v1355 = vld [vmem:[#allocation8 + $0x8] sm:$0xf]
        %v1356 = vld [vmem:[#allocation8 + $0xc] sm:$0xf]
        %v1357 = vld [vmem:[#allocation8 + $0x10] sm:$0xf]
        %v1358 = vld [vmem:[#allocation8 + $0x14] sm:$0xf]
        %v1359 = vld [vmem:[#allocation8 + $0x18] sm:$0xf]
        %v1360 = vld [vmem:[#allocation8 + $0x1c] sm:$0xf]
        %v1361 = vld [vmem:[#allocation8 + $0x20] sm:$0xf]
        %v1362 = vld [vmem:[#allocation8 + $0x24] sm:$0xf]
        %v1363 = vld [vmem:[#allocation8 + $0x28] sm:$0xf]
        %v1364 = vld [vmem:[#allocation8 + $0x2c] sm:$0xf]
        %v1365 = vld [vmem:[#allocation8 + $0x30] sm:$0xf]
        %v1366 = vld [vmem:[#allocation8 + $0x34] sm:$0xf]
        %v1367 = vld [vmem:[#allocation8 + $0x38] sm:$0xf]
        %v1368 = vld [vmem:[#allocation8 + $0x3c] sm:$0xf]
        %v1369 = vld [vmem:[#allocation10 + $0x2] sm:$0x1]
        %v1370 = vperm.slane %v1369, 0
        %v1387 = vunpack.c.l.b16 %v1353
        %v1388 = vunpack.c.l.b16 %v1354
        %v1389 = vunpack.c.l.b16 %v1355
        %v1390 = vunpack.c.l.b16 %v1356
        %v1391 = vunpack.c.l.b16 %v1357
        %v1392 = vunpack.c.l.b16 %v1358
        %v1393 = vunpack.c.l.b16 %v1359
        %v1394 = vunpack.c.l.b16 %v1360
        %v1395 = vunpack.c.l.b16 %v1361
        %v1396 = vunpack.c.l.b16 %v1362
        %v1397 = vunpack.c.l.b16 %v1363
        %v1398 = vunpack.c.l.b16 %v1364
        %v1399 = vunpack.c.l.b16 %v1365
        %v1400 = vunpack.c.l.b16 %v1366
        %v1401 = vunpack.c.l.b16 %v1367
        %v1402 = vunpack.c.l.b16 %v1368
        %v1403 = vpack.c.b16 %v1388, %v1387
        %v1404 = vpack.c.b16 %v1390, %v1389
        %v1405 = vpack.c.b16 %v1392, %v1391
        %v1406 = vpack.c.b16 %v1394, %v1393
        %v1407 = vpack.c.b16 %v1396, %v1395
        %v1408 = vpack.c.b16 %v1398, %v1397
        %v1409 = vpack.c.b16 %v1400, %v1399
        %v1410 = vpack.c.b16 %v1402, %v1401
        %1419 = vmatpush.bf16.msra.mxu0 %v1410
        %1420 = vmatpush.bf16.msra.mxu0 %v1409
        %1421 = vmatpush.bf16.msra.mxu0 %v1408
        %1422 = vmatpush.bf16.msra.mxu0 %v1407
        %1423 = vmatpush.bf16.msra.mxu0 %v1406
        %1424 = vmatpush.bf16.msra.mxu0 %v1405
        %1425 = vmatpush.bf16.msra.mxu0 %v1404
        %1426 = vmatpush.bf16.msra.mxu0 %v1403
        %1427 = vmatmul.bf16.gmra.mxu0 %v1346
        %v1428 = vpop.f32.mrf.mxu0
        %v1429 = vadd.f32 %v1370, %v1428
        %v1430 = vpop.f32.mrf.mxu0
        %v1431 = vadd.f32 %v1370, %v1430
        %1432 = vmatmul.bf16.gmra.mxu0 %v1347
        %v1433 = vpop.f32.mrf.mxu0
        %v1434 = vadd.f32 %v1370, %v1433
        %v1435 = vpop.f32.mrf.mxu0
        %v1436 = vadd.f32 %v1370, %v1435
        %1437 = vmatmul.bf16.gmra.mxu0 %v1348
        %v1438 = vpop.f32.mrf.mxu0
        %v1439 = vadd.f32 %v1370, %v1438
        %v1440 = vpop.f32.mrf.mxu0
        %v1441 = vadd.f32 %v1370, %v1440
        %1442 = vmatmul.bf16.gmra.mxu0 %v1349
        %v1443 = vpop.f32.mrf.mxu0
        %v1444 = vadd.f32 %v1370, %v1443
        %v1445 = vpop.f32.mrf.mxu0
        %v1446 = vadd.f32 %v1370, %v1445
        %1447 = vmatmul.bf16.gmra.mxu0 %v1350
        %v1448 = vpop.f32.mrf.mxu0
        %v1449 = vadd.f32 %v1370, %v1448
        %v1450 = vpop.f32.mrf.mxu0
        %v1451 = vadd.f32 %v1370, %v1450
        %1452 = vmatmul.bf16.gmra.mxu0 %v1351
        %v1453 = vpop.f32.mrf.mxu0
        %v1454 = vadd.f32 %v1370, %v1453
        %v1455 = vpop.f32.mrf.mxu0
        %v1456 = vadd.f32 %v1370, %v1455
        %1457 = vmatmul.bf16.gmra.mxu0 %v1352
        %v1458 = vpop.f32.mrf.mxu0
        %v1459 = vadd.f32 %v1370, %v1458
        %v1460 = vpop.f32.mrf.mxu0
        %v1461 = vadd.f32 %v1370, %v1460
        %1462 = vdwg.mxu0
        %1463 = vst [vmem:[%s317] sm:$0xff] %v1429
        %1464 = vst [vmem:[%s317 + $0x8] sm:$0xff] %v1431
        %1465 = vst [vmem:[%s317 + $0x10] sm:$0xff] %v1434
        %1466 = vst [vmem:[%s317 + $0x18] sm:$0xff] %v1436
        %1467 = vst [vmem:[%s317 + $0x20] sm:$0xff] %v1439
        %1468 = vst [vmem:[%s317 + $0x28] sm:$0xff] %v1441
        %1469 = vst [vmem:[%s317 + $0x30] sm:$0xff] %v1444
        %1470 = vst [vmem:[%s317 + $0x38] sm:$0xff] %v1446
        %1471 = vst [vmem:[%s317 + $0x40] sm:$0xff] %v1449
        %1472 = vst [vmem:[%s317 + $0x48] sm:$0xff] %v1451
        %1473 = vst [vmem:[%s317 + $0x50] sm:$0xff] %v1454
        %1474 = vst [vmem:[%s317 + $0x58] sm:$0xff] %v1456
        %1475 = vst [vmem:[%s317 + $0x60] sm:$0xff] %v1459
        %1476 = vst [vmem:[%s317 + $0x68] sm:$0xff] %v1461
        %s1477 = sand.u32 %s142, 1
        %s1478 = scalar_lea.sflag [#allocation4], %s1477
        %s1479 = sand.u32 %s142, 1
        %s1480 = smul.addr %s1479, 112
        %s1481 = scalar_lea.vmem [#allocation11], %s1480
        // Predicated region
        $region61: #{tpu_custom_call.1} parent=39 // pred_check
          %p1482 = pneg %p152
        $region62: #{tpu_custom_call.1} parent=39 // pred_check_branch
          %1484 = sbr.rel (%p1482) target = $region64
        $region63: #{tpu_custom_call.1} parent=39 // pred_region
          %s1485 = smul.u32 14, %s24
          %s1486 = ssub.s32 25, %s1485
          %p1487 = scmp.lt.s32.totalorder %s1486, 14
          %s1488 = scalar_select %p1487, %s1486, 14
          %s1489 = smul.u32 8, %s1488
          %s1490 = ssub.s32 112, %s1489
          %s1491 = sshll.u32 %s1490, 4
          %1492 = vsyncadd %s1478, %s1491
          %p1493 = scmp.ne.s32.totalorder 0, %s1489
          %s1494 = smul.addr %s1485, 8
          %s1495 = scalar_lea.hbm %s5, %s1494
          %s1496 = smul.u32 8, %s1488
          %s1497 = sshll.u32 %s1481, 4
          %s1498 = int_to_ptr.vmem [resolvable:$true] %s1497
          %s1499 = sshll.u32 %s1495, 4
          %s1500 = int_to_ptr.hbm [resolvable:$true] %s1499
          %s1501 = sshll.u32 %s1496, 4
          %1505 = dma.vmem_to_hbm [thread:$0]  (%p1493), %s1498, %s1501, %s1500, %s1478, 128, 128, 8
        $region64: #{tpu_custom_call.1} parent=39 // pred_fallthru
          _
      $region40: #{tpu_custom_call.1} parent=5 // pred_fallthru
        _
      %p1506 = scmp.le.s32.totalorder 2, %s19
      // Predicated region
      $region65: #{tpu_custom_call.1} parent=5 // pred_check
        %p1507 = pneg %p1506
      $region66: #{tpu_custom_call.1} parent=5 // pred_check_branch
        %1509 = sbr.rel (%p1507) target = $region68
      $region67: #{tpu_custom_call.1} parent=5 // pred_region
        %s1510 = ssub.s32 %s19, 2
        // Predicated region
        $region69: #{tpu_custom_call.1} parent=67 // pred_check
          %p1511 = pneg %p158
        $region70: #{tpu_custom_call.1} parent=67 // pred_check_branch
          %1513 = sbr.rel (%p1511) target = $region72
        $region71: #{tpu_custom_call.1} parent=67 // pred_region
          %s1514 = sand.u32 %s143, 1
          %s1515 = scalar_lea.sflag [#allocation4], %s1514
          %s1516 = sand.u32 %s143, 1
          %s1517 = smul.addr %s1516, 112
          %s1518 = scalar_lea.vmem [#allocation11], %s1517
          %1520 = dma.done %s1515, 1792
        $region72: #{tpu_custom_call.1} parent=67 // pred_fallthru
          _
      $region68: #{tpu_custom_call.1} parent=5 // pred_fallthru
        _
    $region6: #{tpu_custom_call.1} parent=1 // loop_footer
      %s23 = sadd.s32 1, %s19
    $region7: #{tpu_custom_call.1} parent=1 // loop_footer_branch
      %18 = sbr.rel target = $region3
    $region8: #{tpu_custom_call.1} parent=1 // loop_exit
      _
    %1521 = vsyncpa [#allocation3], 1
    %s1522 = scalar_lea.sflag [#allocation3], 1
    %1523 = vsyncpa %s1522, 1
    %1524 = vsyncpa [#allocation6], 1
    %1525 = vsyncpa [#allocation9], 1
    %1526 = vsyncpa [#allocation4], 1
    %s1527 = scalar_lea.sflag [#allocation4], 1
    %1528 = vsyncpa %s1527, 1

</llo_original>
